<compile_context>
chip_gen: v5e
topology: v5e:2x2
jax: 0.10.0
libtpu: 0.0.40
codegen_flags: <defaults>
</compile_context>

<pallas_src>
import math
import functools

import jax
import jax.numpy as jnp
from jax.experimental import pallas as pl
from jax.experimental.pallas import tpu as pltpu


def _round_up(x, m):
    return ((x + m - 1) // m) * m


def _vmem_budget_bytes():
    """Generation-aware VMEM budget (v7x: 64 MiB/TC, v5e/v6e: 128 MiB)."""
    cap = 64 * 1024 * 1024  # conservative default = smallest (v7x per-TensorCore)
    try:
        cap = int(pltpu.get_tpu_info().vmem_capacity_bytes)
    except Exception:
        pass
    return min((cap * 3) // 4, 96 * 1024 * 1024)


def _vmem_estimate_bytes(tm, tail_rows, hop_pad, k_pad, n_freq_pad,
                         in_bytes, out_bytes):
    chunks = 2 * (tm + tail_rows) * hop_pad * in_bytes      # main+tail, double-buffered
    basis = 2 * k_pad * (2 * n_freq_pad) * in_bytes         # basis (conservatively x2)
    out = 2 * n_freq_pad * tm * out_bytes                   # output, double-buffered
    slab = (tm + tail_rows) * hop_pad * 4                   # f32 chunk slab scratch
    frames = tm * k_pad * in_bytes                          # staged frames scratch
    interm = tm * (2 * n_freq_pad) * 4 + 2 * tm * n_freq_pad * 4  # dot result + mag/transpose
    return chunks + basis + out + slab + frames + interm


def _make_stft_mag_kernel(tm, r, hop_pad, n_freq_pad, compute_dtype, out_dtype):
    def kernel(main_ref, tail_ref, basis_ref, out_ref, slab_ref, frames_ref):
        # main_ref  : [tm, hop_pad]              compute_dtype hop-chunks of this tile
        # tail_ref  : [tail_rows, hop_pad]       compute_dtype overlap rows (next tile)
        # basis_ref : [r*hop_pad, 2*n_freq_pad]  compute_dtype fused [cos | -sin]
        # out_ref   : [n_freq_pad, tm]           out_dtype magnitudes (freq-major!)
        # slab_ref  : [tm+tail_rows, hop_pad]    f32 scratch (contiguous chunk slab)
        # frames_ref: [tm, r*hop_pad]            compute_dtype scratch (staged frames)

        # Stage the contiguous chunk slab once (aligned full-block loads/stores;
        # the only cast work is one f32 upcast of ~1x audio per tile).
        slab_ref[0:tm, :] = main_ref[...].astype(jnp.float32)
        slab_ref[tm:, :] = tail_ref[...].astype(jnp.float32)

        # Build the frame matrix: column strip j holds chunk rows j .. j+tm-1.
        # Source reads are sublane-shifted f32 reads; destinations are aligned.
        for j in range(r):
            frames_ref[:, j * hop_pad:(j + 1) * hop_pad] = (
                slab_ref[j:j + tm, :].astype(compute_dtype))

        # Single K-fused MXU matmul (f32 accumulation inside the MXU).
        acc = jnp.dot(frames_ref[...], basis_ref[...],
                      preferred_element_type=jnp.float32)  # [tm, 2*n_freq_pad]
        re = acc[:, :n_freq_pad]
        im = acc[:, n_freq_pad:]
        # TODO(synk): add an epsilon inside the sqrt if this forward is ever
        # differentiated (gradient undefined at exactly zero magnitude).
        mag = jnp.sqrt(re * re + im * im)                   # [tm, n_freq_pad]

        # Transpose in-kernel (XLU, hidden under the MXU) so the output is
        # already freq-major and no external XLA transpose pass is needed.
        out_ref[...] = jnp.transpose(mag, (1, 0)).astype(out_dtype)

    return kernel


def make_stft_basis(window, n_fft, hop_size, compute_dtype=jnp.bfloat16):
    """Precompute the windowed real-DFT basis (call once, reuse every forward).

    Returns [r*hop_pad, 2*n_freq_pad]: cos and -sin parts concatenated along a
    128-lane-padded frequency axis; K is laid out as r chunks of hop_pad rows
    (hop zero-padded to a multiple of 128, samples past n_fft zeroed)."""
    n_freq = n_fft // 2 + 1
    n_freq_pad = _round_up(n_freq, 128)
    hop_pad = _round_up(hop_size, 128)
    r = -(-n_fft // hop_size)

    window = jnp.asarray(window, jnp.float32)
    win_size = window.shape[-1]
    if win_size < n_fft:  # same centering rule as the PyTorch module
        p = n_fft - win_size
        window = jnp.pad(window, (p // 2, p - p // 2))

    n = jnp.arange(n_fft)[:, None]
    k = jnp.arange(n_freq)[None, :]
    # integer phase mod n_fft keeps angles small -> accurate f32 trig for big n_fft
    ang = (2.0 * math.pi / n_fft) * ((n * k) % n_fft).astype(jnp.float32)
    w = window[:, None]
    cos_b = w * jnp.cos(ang)
    sin_b = -w * jnp.sin(ang)
    pad_f = ((0, 0), (0, n_freq_pad - n_freq))
    basis = jnp.concatenate([jnp.pad(cos_b, pad_f), jnp.pad(sin_b, pad_f)], axis=1)
    basis = jnp.pad(basis, ((0, r * hop_size - n_fft), (0, 0)))        # K -> r*hop
    basis = basis.reshape(r, hop_size, 2 * n_freq_pad)
    basis = jnp.pad(basis, ((0, 0), (0, hop_pad - hop_size), (0, 0)))  # hop -> hop_pad
    return basis.reshape(r * hop_pad, 2 * n_freq_pad).astype(compute_dtype)


def causal_stft_magnitude(x, basis, *, n_fft, hop_size, tile_frames=None,
                          out_dtype=jnp.float32):
    """x: [B, 1, S] or [B, S] -> [B, n_fft//2+1, T] magnitude STFT (center=False).

    `basis` comes from make_stft_basis; its dtype selects the MXU operand
    precision (bf16 default; pass f32 for exact torch-f32 parity)."""
    if x.ndim == 3:
        x = x[:, 0, :]  # squeeze(1)
    B, S = x.shape
    assert S >= n_fft, "input shorter than n_fft"
    n_freq = n_fft // 2 + 1
    n_freq_pad = _round_up(n_freq, 128)
    hop_pad = _round_up(hop_size, 128)
    r = -(-n_fft // hop_size)
    k_pad = r * hop_pad
    compute_dtype = basis.dtype
    assert basis.shape == (k_pad, 2 * n_freq_pad), "basis shape mismatch"

    T = 1 + (S - n_fft) // hop_size  # torch.stft(center=False) frame count

    # --- frame tile selection (VMEM-budget / generation aware) ----------------
    tail_rows = _round_up(max(r - 1, 1), 32)              # overlap rows, dtype-safe aligned
    align = (128 * tail_rows) // math.gcd(128, tail_rows)  # tm multiple of 128 & tail_rows
    budget = _vmem_budget_bytes()
    if tile_frames is None:
        # 128 MiB chips (v5e/v6e) afford bigger frame tiles than v7x (64 MiB).
        tile_frames = 1024 if budget >= 90 * 1024 * 1024 else 512
    in_bytes = jnp.dtype(compute_dtype).itemsize
    out_bytes = jnp.dtype(out_dtype).itemsize
    tm_cap = max(align, _round_up(tile_frames, align))
    while (tm_cap > align and
           _vmem_estimate_bytes(tm_cap, tail_rows, hop_pad, k_pad, n_freq_pad,
                                in_bytes, out_bytes) > budget):
        tm_cap -= align
    n_tiles = -(-T // tm_cap)
    tm = _round_up(-(-T // n_tiles), align)   # balance tiles; tm <= tm_cap
    t_pad = n_tiles * tm

    # --- glue: hop-sized chunks in compute dtype (no gather, ~1x HBM pass) ----
    l_needed = t_pad + tail_rows
    total = l_needed * hop_size
    xc = x.astype(compute_dtype)
    if total >= S:
        xc = jnp.pad(xc, ((0, 0), (0, total - S)))
    else:
        xc = xc[:, :total]                     # samples past the last frame are unused
    x_chunks = xc.reshape(B, l_needed, hop_size)
    if hop_pad != hop_size:
        x_chunks = jnp.pad(x_chunks, ((0, 0), (0, 0), (0, hop_pad - hop_size)))

    tail_blk = tm // tail_rows
    kernel = _make_stft_mag_kernel(tm, r, hop_pad, n_freq_pad, compute_dtype, out_dtype)
    # NOTE(megacore): grid=(B, n_tiles), both parallel; for B=1 short clips on
    # v7x one core may idle — acceptable for this workload.
    out = pl.pallas_call(
        kernel,
        out_shape=jax.ShapeDtypeStruct((B, n_freq_pad, t_pad), out_dtype),
        grid_spec=pltpu.PrefetchScalarGridSpec(
            num_scalar_prefetch=0,
            grid=(B, n_tiles),
            in_specs=[
                # main: tm non-overlapping chunk rows of this tile
                pl.BlockSpec((None, tm, hop_pad), lambda b, i: (b, i, 0)),
                # tail: the (r-1) overlap rows at the start of the next tile
                pl.BlockSpec((None, tail_rows, hop_pad),
                             lambda b, i: (b, (i + 1) * tail_blk, 0)),
                # basis: constant index_map -> stays resident in VMEM (fetched once)
                pl.BlockSpec((k_pad, 2 * n_freq_pad), lambda b, i: (0, 0)),
            ],
            out_specs=pl.BlockSpec((None, n_freq_pad, tm), lambda b, i: (b, 0, i)),
            scratch_shapes=[
                pltpu.VMEM((tm + tail_rows, hop_pad), jnp.float32),
                pltpu.VMEM((tm, k_pad), compute_dtype),
            ],
        ),
        compiler_params=pltpu.CompilerParams(
            dimension_semantics=("parallel", "parallel"),
            vmem_limit_bytes=int(budget),
        ),
    )(x_chunks, x_chunks, basis)

    # Already freq-major; only cheap slices remain (usually fuse into the consumer).
    return out[:, :n_freq, :T]


def _reference_stft_magnitude(x, window, n_fft, hop_size):
    # pure-JAX reference mirroring torch.stft(center=False) + magnitude
    if x.ndim == 3:
        x = x[:, 0, :]
    x = x.astype(jnp.float32)
    B, S = x.shape
    T = 1 + (S - n_fft) // hop_size
    idx = jnp.arange(T)[:, None] * hop_size + jnp.arange(n_fft)[None, :]
    frames = x[:, idx] * window[None, None, :]
    spec = jnp.fft.rfft(frames, n=n_fft, axis=-1)
    return jnp.transpose(jnp.abs(spec), (0, 2, 1))  # [B, n_freq, T]


if __name__ == "__main__":
    # module hyperparameters (synthetic, small)
    n_fft = 16
    hop_size = 4
    # hann window, periodic (torch.hann_window default), win_size == n_fft
    nn_ = jnp.arange(n_fft, dtype=jnp.float32)
    window = 0.5 * (1.0 - jnp.cos(2.0 * math.pi * nn_ / n_fft))

    B = 2

    # 1) default path: bf16 MXU operands, single frame tile, f32 output
    L1 = 16
    x1 = jax.random.normal(jax.random.PRNGKey(0), (B, 1, hop_size * L1),
                           dtype=jnp.float32)
    T1 = 1 + (hop_size * L1 - n_fft) // hop_size
    ref1 = _reference_stft_magnitude(x1, window, n_fft, hop_size)
    basis_bf16 = make_stft_basis(window, n_fft, hop_size, jnp.bfloat16)
    fwd_bf16 = jax.jit(functools.partial(causal_stft_magnitude,
                                         n_fft=n_fft, hop_size=hop_size))
    out1 = jax.block_until_ready(fwd_bf16(x1, basis_bf16))
    assert out1.shape == (B, n_fft // 2 + 1, T1)
    assert jnp.allclose(out1, ref1, atol=5e-2, rtol=5e-2), "bf16 mismatch vs reference"

    # 2) exact-f32 path over multiple frame tiles
    L2 = 300
    x2 = jax.random.normal(jax.random.PRNGKey(1), (B, 1, hop_size * L2),
                           dtype=jnp.float32)
    T2 = 1 + (hop_size * L2 - n_fft) // hop_size
    ref2 = _reference_stft_magnitude(x2, window, n_fft, hop_size)
    basis_f32 = make_stft_basis(window, n_fft, hop_size, jnp.float32)
    fwd_f32 = jax.jit(functools.partial(causal_stft_magnitude,
                                        n_fft=n_fft, hop_size=hop_size,
                                        tile_frames=128))
    out2 = jax.block_until_ready(fwd_f32(x2, basis_f32))
    assert out2.shape == (B, n_fft // 2 + 1, T2)
    assert jnp.allclose(out2, ref2, atol=1e-4, rtol=1e-4), "f32 mismatch vs reference"

    # 3) bf16-output option (halves output HBM traffic if the consumer tolerates it)
    fwd_bf16_out = jax.jit(functools.partial(causal_stft_magnitude,
                                             n_fft=n_fft, hop_size=hop_size,
                                             out_dtype=jnp.bfloat16))
    out3 = jax.block_until_ready(fwd_bf16_out(x1, basis_bf16))
    assert out3.dtype == jnp.bfloat16 and out3.shape == (B, n_fft // 2 + 1, T1)
    assert jnp.allclose(out3.astype(jnp.float32), ref1, atol=6e-2, rtol=6e-2), \
        "bf16-output mismatch vs reference"

    print("KERNEL_OK")
</pallas_src>

<mosaic_0001>
module attributes {stable_mosaic.version = 11 : i64} {
  func.func @kernel(%arg0: i32, %arg1: i32, %arg2: memref<1x128x128xbf16, #tpu.memory_space<vmem>>, %arg3: memref<1x32x128xbf16, #tpu.memory_space<vmem>>, %arg4: memref<512x256xbf16, #tpu.memory_space<vmem>>, %arg5: memref<1x128x128xf32, #tpu.memory_space<vmem>>, %arg6: memref<160x128xf32, #tpu.memory_space<vmem>>, %arg7: memref<128x512xbf16, #tpu.memory_space<vmem>>) attributes {dimension_semantics = [#tpu.dimension_semantics<parallel>, #tpu.dimension_semantics<parallel>], iteration_bounds = array<i64: 2, 1>, scalar_prefetch = 0 : i64, scratch_operands = 2 : i64, tpu.core_type = #tpu.core_type<tc>, window_params = [{transform_indices = @transform_0, window_bounds = array<i64: 1, 128, 128>}, {transform_indices = @transform_1, window_bounds = array<i64: 1, 32, 128>}, {pipeline_mode = #tpu.pipeline_mode<synchronous>, transform_indices = @transform_2, window_bounds = array<i64: 512, 256>}, {transform_indices = @transform_3, window_bounds = array<i64: 1, 128, 128>}]} {
    %c0 = arith.constant 0 : index
    %c0_0 = arith.constant 0 : index
    %c0_1 = arith.constant 0 : index
    %0 = vector.load %arg2[%c0, %c0_0, %c0_1] : memref<1x128x128xbf16, #tpu.memory_space<vmem>>, vector<1x128x128xbf16>
    %1 = vector.shape_cast %0 : vector<1x128x128xbf16> to vector<128x128xbf16>
    %2 = arith.extf %1 : vector<128x128xbf16> to vector<128x128xf32>
    %c0_2 = arith.constant 0 : index
    %c0_3 = arith.constant 0 : index
    %3 = vector.load %arg6[%c0_2, %c0_3] : memref<160x128xf32, #tpu.memory_space<vmem>>, vector<128x128xf32>
    tpu.vector_store %arg6[%c0_2, %c0_3], %2 {strides = array<i32>} : memref<160x128xf32, #tpu.memory_space<vmem>>, vector<128x128xf32>,
    %c0_4 = arith.constant 0 : index
    %c0_5 = arith.constant 0 : index
    %c0_6 = arith.constant 0 : index
    %4 = vector.load %arg3[%c0_4, %c0_5, %c0_6] : memref<1x32x128xbf16, #tpu.memory_space<vmem>>, vector<1x32x128xbf16>
    %5 = vector.shape_cast %4 : vector<1x32x128xbf16> to vector<32x128xbf16>
    %6 = arith.extf %5 : vector<32x128xbf16> to vector<32x128xf32>
    %c128 = arith.constant 128 : index
    %c0_7 = arith.constant 0 : index
    %7 = vector.load %arg6[%c128, %c0_7] : memref<160x128xf32, #tpu.memory_space<vmem>>, vector<32x128xf32>
    tpu.vector_store %arg6[%c128, %c0_7], %6 {strides = array<i32>} : memref<160x128xf32, #tpu.memory_space<vmem>>, vector<32x128xf32>,
    %c0_8 = arith.constant 0 : index
    %c0_9 = arith.constant 0 : index
    %8 = vector.load %arg6[%c0_8, %c0_9] : memref<160x128xf32, #tpu.memory_space<vmem>>, vector<128x128xf32>
    %9 = arith.truncf %8 : vector<128x128xf32> to vector<128x128xbf16>
    %c0_10 = arith.constant 0 : index
    %c0_11 = arith.constant 0 : index
    %10 = vector.load %arg7[%c0_10, %c0_11] : memref<128x512xbf16, #tpu.memory_space<vmem>>, vector<128x128xbf16>
    tpu.vector_store %arg7[%c0_10, %c0_11], %9 {strides = array<i32>} : memref<128x512xbf16, #tpu.memory_space<vmem>>, vector<128x128xbf16>,
    %c1 = arith.constant 1 : index
    %c0_12 = arith.constant 0 : index
    %11 = vector.load %arg6[%c1, %c0_12] : memref<160x128xf32, #tpu.memory_space<vmem>>, vector<128x128xf32>
    %12 = arith.truncf %11 : vector<128x128xf32> to vector<128x128xbf16>
    %c0_13 = arith.constant 0 : index
    %c128_14 = arith.constant 128 : index
    %13 = vector.load %arg7[%c0_13, %c128_14] : memref<128x512xbf16, #tpu.memory_space<vmem>>, vector<128x128xbf16>
    tpu.vector_store %arg7[%c0_13, %c128_14], %12 {strides = array<i32>} : memref<128x512xbf16, #tpu.memory_space<vmem>>, vector<128x128xbf16>,
    %c2 = arith.constant 2 : index
    %c0_15 = arith.constant 0 : index
    %14 = vector.load %arg6[%c2, %c0_15] : memref<160x128xf32, #tpu.memory_space<vmem>>, vector<128x128xf32>
    %15 = arith.truncf %14 : vector<128x128xf32> to vector<128x128xbf16>
    %c0_16 = arith.constant 0 : index
    %c256 = arith.constant 256 : index
    %16 = vector.load %arg7[%c0_16, %c256] : memref<128x512xbf16, #tpu.memory_space<vmem>>, vector<128x128xbf16>
    tpu.vector_store %arg7[%c0_16, %c256], %15 {strides = array<i32>} : memref<128x512xbf16, #tpu.memory_space<vmem>>, vector<128x128xbf16>,
    %c3 = arith.constant 3 : index
    %c0_17 = arith.constant 0 : index
    %17 = vector.load %arg6[%c3, %c0_17] : memref<160x128xf32, #tpu.memory_space<vmem>>, vector<128x128xf32>
    %18 = arith.truncf %17 : vector<128x128xf32> to vector<128x128xbf16>
    %c0_18 = arith.constant 0 : index
    %c384 = arith.constant 384 : index
    %19 = vector.load %arg7[%c0_18, %c384] : memref<128x512xbf16, #tpu.memory_space<vmem>>, vector<128x128xbf16>
    tpu.vector_store %arg7[%c0_18, %c384], %18 {strides = array<i32>} : memref<128x512xbf16, #tpu.memory_space<vmem>>, vector<128x128xbf16>,
    %c0_19 = arith.constant 0 : index
    %c0_20 = arith.constant 0 : index
    %20 = vector.load %arg7[%c0_19, %c0_20] : memref<128x512xbf16, #tpu.memory_space<vmem>>, vector<128x512xbf16>
    %c0_21 = arith.constant 0 : index
    %c0_22 = arith.constant 0 : index
    %21 = vector.load %arg4[%c0_21, %c0_22] : memref<512x256xbf16, #tpu.memory_space<vmem>>, vector<512x256xbf16>
    %cst = arith.constant dense<0.000000e+00> : vector<128x256xf32>
    %22 = tpu.matmul %20, %21, %cst {dimension_numbers = #tpu.dot_dimension_numbers<[1], [0], [0], [1], [0, 0, 1, 1], [], []>} : vector<128x512xbf16>, vector<512x256xbf16>, vector<128x256xf32> -> vector<128x256xf32>
    %23 = vector.extract_strided_slice %22 {offsets = [0, 0], sizes = [128, 128], strides = [1, 1]} : vector<128x256xf32> to vector<128x128xf32>
    %24 = vector.extract_strided_slice %22 {offsets = [0, 128], sizes = [128, 128], strides = [1, 1]} : vector<128x256xf32> to vector<128x128xf32>
    %25 = arith.mulf %23, %23 : vector<128x128xf32>
    %26 = arith.mulf %24, %24 : vector<128x128xf32>
    %27 = arith.addf %25, %26 : vector<128x128xf32>
    %28 = math.sqrt %27 : vector<128x128xf32>
    %29 = tpu.transpose %28, [1, 0] : vector<128x128xf32> -> vector<128x128xf32>
    %c0_23 = arith.constant 0 : index
    %c0_24 = arith.constant 0 : index
    %c0_25 = arith.constant 0 : index
    %30 = vector.load %arg5[%c0_23, %c0_24, %c0_25] : memref<1x128x128xf32, #tpu.memory_space<vmem>>, vector<1x128x128xf32>
    %31 = vector.shape_cast %30 : vector<1x128x128xf32> to vector<128x128xf32>
    %32 = vector.shape_cast %29 : vector<128x128xf32> to vector<1x128x128xf32>
    tpu.vector_store %arg5[%c0_23, %c0_24, %c0_25], %32 {strides = array<i32>} : memref<1x128x128xf32, #tpu.memory_space<vmem>>, vector<1x128x128xf32>,
    return
  }
  func.func @transform_0(%arg0: i32, %arg1: i32) -> (i32, i32, i32) {
    %c0_i32 = arith.constant 0 : i32
    %c0_i32_0 = arith.constant 0 : i32
    return %arg0, %arg1, %c0_i32 : i32, i32, i32
  }
  func.func @transform_1(%arg0: i32, %arg1: i32) -> (i32, i32, i32) {
    %c1_i32 = arith.constant 1 : i32
    %0 = arith.addi %arg1, %c1_i32 : i32
    %c4_i32 = arith.constant 4 : i32
    %1 = arith.muli %0, %c4_i32 : i32
    %c0_i32 = arith.constant 0 : i32
    %c0_i32_0 = arith.constant 0 : i32
    return %arg0, %1, %c0_i32 : i32, i32, i32
  }
  func.func @transform_2(%arg0: i32, %arg1: i32) -> (i32, i32) {
    %c0_i32 = arith.constant 0 : i32
    %c0_i32_0 = arith.constant 0 : i32
    %c0_i32_1 = arith.constant 0 : i32
    return %c0_i32, %c0_i32_0 : i32, i32
  }
  func.func @transform_3(%arg0: i32, %arg1: i32) -> (i32, i32, i32) {
    %c0_i32 = arith.constant 0 : i32
    %c0_i32_0 = arith.constant 0 : i32
    return %arg0, %c0_i32, %arg1 : i32, i32, i32
  }
}

</mosaic_0001>

<llo_original>
// kernel: causal_stft_magnitude.1
$region0: #{causal_stft_magnitude.1}
  #allocation0 [shape = 'u32[]', space=smem, size = 0x4, offset = 0x4, fixed_abs, tag = 'smem constant byte address 0x4 - core index']
  #allocation1 [shape = 'u32[72,128]{1,0:T(1,128)}', space=vmem, size = 0x9000, scoped, tag = 'internal scratch']
  #allocation2 [shape = 'f32[160,128]{1,0:T(8,128)}', space=vmem, size = 0x14000, scoped, tag = 'scratch operand']
  #allocation3 [shape = 'bf16[128,512]{1,0:T(8,128)(2,1)}', space=vmem, size = 0x20000, scoped, tag = 'scratch operand']
  %s0 = inlined_call_operand.vmem [shape: bf16[2,160,128], index: 0, kind: input, shape index: {}, may-alias: {0,1}]
  %s1 = inlined_call_operand.vmem [shape: bf16[2,160,128], index: 1, kind: input, shape index: {}, may-alias: {0,1}]
  %s2 = inlined_call_operand.hbm [shape: bf16[512,256], index: 2, kind: input, shape index: {}]
  %s3 = inlined_call_operand.vmem [shape: f32[2,128,128], index: 3, kind: output, shape index: {}]
  %s4 = sld [smem:[#allocation0]]
  $region49: #{causal_stft_magnitude.1} parent=0
    _
  %s6 = ssub.s32 1, %s4
  %s7 = scalar_select 0, %s6, %s4
  $region1: #{causal_stft_magnitude.1} parent=0
    #allocation4 [shape = 'u8[262144]{0}', space=vmem, size = 0x40000, scoped, tag = 'input window, operand 2, single buffered']
    #allocation5 [shape = 's32[2]{0}', space=sflag, size = 0x8, scoped, tag = 'scoped memory for causal_stft_magnitude.1']
    %8 = vsyncpa [#allocation5], 0
    loop: start=0, step=1, limit=4
    $region2: #{causal_stft_magnitude.1} parent=1 // loop_pre_header
      _
    $region3: #{causal_stft_magnitude.1} parent=1 // loop_header
      %s10 = sphi 0, %s14
      %p11 = scmp.ge.s32.totalorder %s10, 4
      %s17 = sphi 0, %s29
      %s18 = sphi 0, %s25
      %s19 = sphi 0, %s17
      %s20 = sphi 0, %s18
      %s21 = sphi 0, %s19
      %s22 = sphi 0, %s20
      %s34 = sphi 0, %s36
      %s37 = sphi 0, %s34
      %s38 = sphi 0, %s37
      %s54 = sphi 0, %s38
      %s66 = sphi 0, %s68
      %s69 = sphi 0, %s66
      %s70 = sphi 0, %s69
      %s86 = sphi 0, %s70
      %s90 = sphi 0, %s90
      %s92 = sphi 0, %s90
      %s93 = sphi 0, %s92
      %s107 = sphi 0, %s93
      %s115 = sphi 0, %s117
      %s118 = sphi 0, %s115
      %s119 = sphi 0, %s118
      %s135 = sphi 0, %s119
    $region4: #{causal_stft_magnitude.1} parent=1 // loop_header_branch
      %13 = sbr.rel (%p11) target = $region8
    $region5: #{causal_stft_magnitude.1} parent=1 // loop_body
      %s15 = ssub.s32 %s10, 1
      %s16 = ssub.s32 %s10, 2
      %s23 = sadd.s32 1, %s18
      %p24 = scmp.ge.s32.totalorder %s23, 1
      %s25 = scalar_select %p24, 0, %s23
      %s26 = sadd.s32 1, %s17
      %s27 = scalar_select %p24, %s26, %s17
      %p28 = scmp.ge.s32.totalorder %s27, 2
      %s29 = scalar_select %p28, 0, %s27
      %s30 = ssub.s32 %s17, %s29
      %s31 = ssub.s32 %s18, %s25
      %s32 = sor.u32 %s30, %s31
      %p33 = scmp.eq.s32.totalorder %s32, 0
      %s35 = sadd.s32 %s34, 1
      %s36 = scalar_select %p33, %s34, %s35
      %p39 = pneg %p33
      %p40 = scmp.eq.s32.totalorder %s10, 1
      %p41 = por %p39, %p40
      %p42 = scmp.ne.s32.totalorder %s34, %s37
      %p43 = scmp.eq.s32.totalorder %s10, 0
      %p44 = por %p42, %p43
      %p45 = scmp.ne.s32.totalorder %s34, %s37
      %p46 = scmp.eq.s32.totalorder %s15, 1
      %p47 = por %p45, %p46
      %p48 = scmp.ne.s32.totalorder %s37, %s38
      %p49 = scmp.eq.s32.totalorder %s15, 0
      %p50 = por %p48, %p49
      %p51 = scmp.ne.s32.totalorder %s37, %s38
      %p52 = scmp.eq.s32.totalorder %s16, 1
      %p53 = por %p51, %p52
      %p55 = scmp.ne.s32.totalorder %s38, %s54
      %p56 = scmp.eq.s32.totalorder %s16, 0
      %p57 = por %p55, %p56
      %s58 = sadd.s32 %s18, 1
      %s59 = smul.u32 %s58, 4
      %s60 = sadd.s32 %s25, 1
      %s61 = smul.u32 %s60, 4
      %s62 = ssub.s32 %s17, %s29
      %s63 = ssub.s32 %s59, %s61
      %s64 = sor.u32 %s62, %s63
      %p65 = scmp.eq.s32.totalorder %s64, 0
      %s67 = sadd.s32 %s66, 1
      %s68 = scalar_select %p65, %s66, %s67
      %p71 = pneg %p65
      %p72 = scmp.eq.s32.totalorder %s10, 1
      %p73 = por %p71, %p72
      %p74 = scmp.ne.s32.totalorder %s66, %s69
      %p75 = scmp.eq.s32.totalorder %s10, 0
      %p76 = por %p74, %p75
      %p77 = scmp.ne.s32.totalorder %s66, %s69
      %p78 = scmp.eq.s32.totalorder %s15, 1
      %p79 = por %p77, %p78
      %p80 = scmp.ne.s32.totalorder %s69, %s70
      %p81 = scmp.eq.s32.totalorder %s15, 0
      %p82 = por %p80, %p81
      %p83 = scmp.ne.s32.totalorder %s69, %s70
      %p84 = scmp.eq.s32.totalorder %s16, 1
      %p85 = por %p83, %p84
      %p87 = scmp.ne.s32.totalorder %s70, %s86
      %p88 = scmp.eq.s32.totalorder %s16, 0
      %p89 = por %p87, %p88
      %s91 = sadd.s32 %s90, 1
      %p94 = scmp.eq.s32.totalorder %s10, 1
      %p95 = scmp.ne.s32.totalorder %s90, %s92
      %p96 = scmp.eq.s32.totalorder %s10, 0
      %p97 = por %p95, %p96
      %p98 = scmp.ne.s32.totalorder %s90, %s92
      %p99 = scmp.eq.s32.totalorder %s15, 1
      %p100 = por %p98, %p99
      %p101 = scmp.ne.s32.totalorder %s92, %s93
      %p102 = scmp.eq.s32.totalorder %s15, 0
      %p103 = por %p101, %p102
      %p104 = scmp.ne.s32.totalorder %s92, %s93
      %p105 = scmp.eq.s32.totalorder %s16, 1
      %p106 = por %p104, %p105
      %p108 = scmp.ne.s32.totalorder %s93, %s107
      %p109 = scmp.eq.s32.totalorder %s16, 0
      %p110 = por %p108, %p109
      %s111 = ssub.s32 %s17, %s29
      %s112 = ssub.s32 %s18, %s25
      %s113 = sor.u32 %s111, %s112
      %p114 = scmp.eq.s32.totalorder %s113, 0
      %s116 = sadd.s32 %s115, 1
      %s117 = scalar_select %p114, %s115, %s116
      %p120 = pneg %p114
      %p121 = scmp.eq.s32.totalorder %s10, 1
      %p122 = por %p120, %p121
      %p123 = scmp.ne.s32.totalorder %s115, %s118
      %p124 = scmp.eq.s32.totalorder %s10, 0
      %p125 = por %p123, %p124
      %p126 = scmp.ne.s32.totalorder %s115, %s118
      %p127 = scmp.eq.s32.totalorder %s15, 1
      %p128 = por %p126, %p127
      %p129 = scmp.ne.s32.totalorder %s118, %s119
      %p130 = scmp.eq.s32.totalorder %s15, 0
      %p131 = por %p129, %p130
      %p132 = scmp.ne.s32.totalorder %s118, %s119
      %p133 = scmp.eq.s32.totalorder %s16, 1
      %p134 = por %p132, %p133
      %p136 = scmp.ne.s32.totalorder %s119, %s135
      %p137 = scmp.eq.s32.totalorder %s16, 0
      %p138 = por %p136, %p137
      %p139 = scmp.le.s32.totalorder 1, %s10
      %p140 = scmp.lt.s32.totalorder %s10, 3
      %p141 = pnand %p139, %p140
      %p142 = pneg %p141
      // Predicated region
      $region9: #{causal_stft_magnitude.1} parent=5 // pred_check
        _
      $region10: #{causal_stft_magnitude.1} parent=5 // pred_check_branch
        %144 = sbr.rel (%p141) target = $region12
      $region11: #{causal_stft_magnitude.1} parent=5 // pred_region
        %s145 = ssub.s32 %s10, 1
        // Predicated region
        $region13: #{causal_stft_magnitude.1} parent=11 // pred_check
          %p146 = pneg %p103
        $region14: #{causal_stft_magnitude.1} parent=11 // pred_check_branch
          %148 = sbr.rel (%p146) target = $region16
        $region15: #{causal_stft_magnitude.1} parent=11 // pred_region
          %150 = vsyncadd [#allocation5], 0
          %s151 = sshll.u32 %s2, 4
          %s152 = int_to_ptr.hbm [resolvable:$true] %s151
          %s153 = sshll.u32 [#allocation4], 4
          %s154 = int_to_ptr.vmem [resolvable:$true] %s153
          %159 = dma.hbm_to_vmem [thread:$0]  %s152, 8192, %s154, [#allocation5], 128, 128, 8
        $region16: #{causal_stft_magnitude.1} parent=11 // pred_fallthru
          _
      $region12: #{causal_stft_magnitude.1} parent=5 // pred_fallthru
        _
      %p160 = scmp.lt.s32.totalorder %s10, 2
      // Predicated region
      $region17: #{causal_stft_magnitude.1} parent=5 // pred_check
        %p161 = pneg %p160
      $region18: #{causal_stft_magnitude.1} parent=5 // pred_check_branch
        %163 = sbr.rel (%p161) target = $region20
      $region19: #{causal_stft_magnitude.1} parent=5 // pred_region
        // Predicated region
        $region21: #{causal_stft_magnitude.1} parent=19 // pred_check
          %p164 = pneg %p44
        $region22: #{causal_stft_magnitude.1} parent=19 // pred_check_branch
          %166 = sbr.rel (%p164) target = $region24
        $region23: #{causal_stft_magnitude.1} parent=19 // pred_region
          %s167 = smul.u32 16, %s18
          %s168 = ssub.s32 20, %s167
          %p169 = scmp.lt.s32.totalorder %s168, 16
          %s170 = scalar_select %p169, %s168, 16
          %s171 = smul.u32 4, %s170
          %p172 = scmp.lt.s32.totalorder %s17, 1
          %s173 = scalar_select %p172, %s17, 1
          %p174 = scmp.lt.s32.totalorder %s167, 19
          %s175 = scalar_select %p174, %s167, 19
          %s176 = smul.addr %s173, 20
          %s177 = sadd.s32 %s175, %s176
          %s178 = smul.addr %s177, 4
          %s179 = scalar_lea.vmem %s0, %s178
          %s180 = smul.u32 16, %s18
          %s181 = ssub.s32 20, %s180
          %p182 = scmp.lt.s32.totalorder %s181, 16
          %s183 = scalar_select %p182, %s181, 16
          %s184 = smul.u32 4, %s183
        $region24: #{causal_stft_magnitude.1} parent=19 // pred_fallthru
          _
        // Predicated region
        $region25: #{causal_stft_magnitude.1} parent=19 // pred_check
          %p185 = pneg %p76
        $region26: #{causal_stft_magnitude.1} parent=19 // pred_check_branch
          %187 = sbr.rel (%p185) target = $region28
        $region27: #{causal_stft_magnitude.1} parent=19 // pred_region
          %s188 = sadd.s32 %s18, 1
          %s189 = smul.u32 %s188, 4
          %s190 = smul.u32 4, %s189
          %p191 = scmp.lt.s32.totalorder %s17, 1
          %s192 = scalar_select %p191, %s17, 1
          %p193 = scmp.lt.s32.totalorder %s190, 19
          %s194 = scalar_select %p193, %s190, 19
          %s195 = smul.addr %s192, 20
          %s196 = sadd.s32 %s194, %s195
          %s197 = smul.addr %s196, 4
          %s198 = scalar_lea.vmem %s1, %s197
          %s199 = sadd.s32 %s18, 1
          %s200 = smul.u32 %s199, 4
          %s201 = smul.u32 4, %s200
        $region28: #{causal_stft_magnitude.1} parent=19 // pred_fallthru
          _
      $region20: #{causal_stft_magnitude.1} parent=5 // pred_fallthru
        _
      %p202 = scmp.le.s32.totalorder 1, %s10
      %p203 = scmp.lt.s32.totalorder %s10, 3
      %p204 = pnand %p202, %p203
      %p205 = pneg %p204
      // Predicated region
      $region29: #{causal_stft_magnitude.1} parent=5 // pred_check
        _
      $region30: #{causal_stft_magnitude.1} parent=5 // pred_check_branch
        %207 = sbr.rel (%p204) target = $region32
      $region31: #{causal_stft_magnitude.1} parent=5 // pred_region
        %s208 = ssub.s32 %s10, 1
        // Predicated region
        $region33: #{causal_stft_magnitude.1} parent=31 // pred_check
          %p209 = pneg %p103
        $region34: #{causal_stft_magnitude.1} parent=31 // pred_check_branch
          %211 = sbr.rel (%p209) target = $region36
        $region35: #{causal_stft_magnitude.1} parent=31 // pred_region
          %213 = dma.done [#allocation5], 8192
        $region36: #{causal_stft_magnitude.1} parent=31 // pred_fallthru
          _
        %s214 = smul.u32 16, %s20
        %s215 = ssub.s32 20, %s214
        %p216 = scmp.lt.s32.totalorder %s215, 16
        %s217 = scalar_select %p216, %s215, 16
        %s218 = smul.u32 4, %s217
        %p219 = scmp.lt.s32.totalorder %s19, 1
        %s220 = scalar_select %p219, %s19, 1
        %p221 = scmp.lt.s32.totalorder %s214, 19
        %s222 = scalar_select %p221, %s214, 19
        %s223 = smul.addr %s220, 20
        %s224 = sadd.s32 %s222, %s223
        %s225 = smul.addr %s224, 4
        %s226 = scalar_lea.vmem %s0, %s225
        %p227 = pneg %p50
        %p228 = pneg %p47
        %s229 = sadd.s32 %s20, 1
        %s230 = smul.u32 %s229, 4
        %s231 = smul.u32 4, %s230
        %p232 = scmp.lt.s32.totalorder %s19, 1
        %s233 = scalar_select %p232, %s19, 1
        %p234 = scmp.lt.s32.totalorder %s231, 19
        %s235 = scalar_select %p234, %s231, 19
        %s236 = smul.addr %s233, 20
        %s237 = sadd.s32 %s235, %s236
        %s238 = smul.addr %s237, 4
        %s239 = scalar_lea.vmem %s1, %s238
        %p240 = pneg %p82
        %p241 = pneg %p79
        %p242 = pneg %p103
        %p243 = pneg %p100
        %p244 = pneg %p131
        %p245 = pneg %p128
        %p246 = scmp.lt.s32.totalorder %s19, 1
        %s247 = scalar_select %p246, %s19, 1
        %p248 = scmp.lt.s32.totalorder %s20, 0
        %s249 = scalar_select %p248, %s20, 0
        %s250 = smul.addr %s247, 16
        %s251 = sadd.s32 %s249, %s250
        %s252 = smul.addr %s251, 8
        %s253 = scalar_lea.vmem %s3, %s252
        %s254 = smul.u32 16, %s20
        %s255 = ssub.s32 20, %s254
        %p256 = scmp.lt.s32.totalorder %s255, 16
        %s257 = scalar_select %p256, %s255, 16
        %s258 = smul.u32 4, %s257
        %p259 = scmp.lt.s32.totalorder %s19, 1
        %s260 = scalar_select %p259, %s19, 1
        %p261 = scmp.lt.s32.totalorder %s254, 19
        %s262 = scalar_select %p261, %s254, 19
        %s263 = smul.addr %s260, 20
        %s264 = sadd.s32 %s262, %s263
        %s265 = smul.addr %s264, 4
        %s266 = scalar_lea.vmem %s0, %s265
        %s267 = smul.u32 16, %s20
        %s268 = ssub.s32 20, %s267
        %p269 = scmp.lt.s32.totalorder %s268, 16
        %s270 = scalar_select %p269, %s268, 16
        %s271 = smul.u32 4, %s270
        %s272 = sadd.s32 %s20, 1
        %s273 = smul.u32 %s272, 4
        %s274 = smul.u32 4, %s273
        %p275 = scmp.lt.s32.totalorder %s19, 1
        %s276 = scalar_select %p275, %s19, 1
        %p277 = scmp.lt.s32.totalorder %s274, 19
        %s278 = scalar_select %p277, %s274, 19
        %s279 = smul.addr %s276, 20
        %s280 = sadd.s32 %s278, %s279
        %s281 = smul.addr %s280, 4
        %s282 = scalar_lea.vmem %s1, %s281
        %s283 = sadd.s32 %s20, 1
        %s284 = smul.u32 %s283, 4
        %s285 = smul.u32 4, %s284
        %p286 = scmp.lt.s32.totalorder %s19, 1
        %s287 = scalar_select %p286, %s19, 1
        %p288 = scmp.lt.s32.totalorder %s20, 0
        %s289 = scalar_select %p288, %s20, 0
        %s290 = smul.addr %s287, 16
        %s291 = sadd.s32 %s289, %s290
        %s292 = smul.addr %s291, 8
        %s293 = scalar_lea.vmem %s3, %s292
        %v294 = vld [vmem:[%s266] sm:$0xf]
        %v295 = vld [vmem:[%s266 + $0x4] sm:$0xf]
        %v296 = vld [vmem:[%s266 + $0x8] sm:$0xf]
        %v297 = vld [vmem:[%s266 + $0xc] sm:$0xf]
        %v298 = vld [vmem:[%s266 + $0x10] sm:$0xf]
        %v299 = vld [vmem:[%s266 + $0x14] sm:$0xf]
        %v300 = vld [vmem:[%s266 + $0x18] sm:$0xf]
        %v301 = vld [vmem:[%s266 + $0x1c] sm:$0xf]
        %v302 = vld [vmem:[%s266 + $0x20] sm:$0xf]
        %v303 = vld [vmem:[%s266 + $0x24] sm:$0xf]
        %v304 = vld [vmem:[%s266 + $0x28] sm:$0xf]
        %v305 = vld [vmem:[%s266 + $0x2c] sm:$0xf]
        %v306 = vld [vmem:[%s266 + $0x30] sm:$0xf]
        %v307 = vld [vmem:[%s266 + $0x34] sm:$0xf]
        %v308 = vld [vmem:[%s266 + $0x38] sm:$0xf]
        %v309 = vld [vmem:[%s266 + $0x3c] sm:$0xf]
        %v310 = vunpack.c.l.bf16 %v294
        %v311 = vunpack.c.l.bf16 %v295
        %v312 = vunpack.c.l.bf16 %v296
        %v313 = vunpack.c.l.bf16 %v297
        %v314 = vunpack.c.l.bf16 %v298
        %v315 = vunpack.c.l.bf16 %v299
        %v316 = vunpack.c.l.bf16 %v300
        %v317 = vunpack.c.l.bf16 %v301
        %v318 = vunpack.c.l.bf16 %v302
        %v319 = vunpack.c.l.bf16 %v303
        %v320 = vunpack.c.l.bf16 %v304
        %v321 = vunpack.c.l.bf16 %v305
        %v322 = vunpack.c.l.bf16 %v306
        %v323 = vunpack.c.l.bf16 %v307
        %v324 = vunpack.c.l.bf16 %v308
        %v325 = vunpack.c.l.bf16 %v309
        %326 = vst [vmem:[#allocation2] sm:$0xff] %v310
        %327 = vst [vmem:[#allocation2 + $0x8] sm:$0xff] %v311
        %328 = vst [vmem:[#allocation2 + $0x10] sm:$0xff] %v312
        %329 = vst [vmem:[#allocation2 + $0x18] sm:$0xff] %v313
        %330 = vst [vmem:[#allocation2 + $0x20] sm:$0xff] %v314
        %331 = vst [vmem:[#allocation2 + $0x28] sm:$0xff] %v315
        %332 = vst [vmem:[#allocation2 + $0x30] sm:$0xff] %v316
        %333 = vst [vmem:[#allocation2 + $0x38] sm:$0xff] %v317
        %334 = vst [vmem:[#allocation2 + $0x40] sm:$0xff] %v318
        %335 = vst [vmem:[#allocation2 + $0x48] sm:$0xff] %v319
        %336 = vst [vmem:[#allocation2 + $0x50] sm:$0xff] %v320
        %337 = vst [vmem:[#allocation2 + $0x58] sm:$0xff] %v321
        %338 = vst [vmem:[#allocation2 + $0x60] sm:$0xff] %v322
        %339 = vst [vmem:[#allocation2 + $0x68] sm:$0xff] %v323
        %340 = vst [vmem:[#allocation2 + $0x70] sm:$0xff] %v324
        %341 = vst [vmem:[#allocation2 + $0x78] sm:$0xff] %v325
        %v342 = vld [vmem:[%s282] sm:$0xf]
        %v343 = vld [vmem:[%s282 + $0x4] sm:$0xf]
        %v344 = vld [vmem:[%s282 + $0x8] sm:$0xf]
        %v345 = vld [vmem:[%s282 + $0xc] sm:$0xf]
        %v346 = vunpack.c.l.bf16 %v342
        %v347 = vunpack.c.l.bf16 %v343
        %v348 = vunpack.c.l.bf16 %v344
        %v349 = vunpack.c.l.bf16 %v345
        %350 = vst [vmem:[#allocation2 + $0x80] sm:$0xff] %v346
        %351 = vst [vmem:[#allocation2 + $0x88] sm:$0xff] %v347
        %352 = vst [vmem:[#allocation2 + $0x90] sm:$0xff] %v348
        %353 = vst [vmem:[#allocation2 + $0x98] sm:$0xff] %v349
        %v354 = vld [vmem:[#allocation2] sm:$0xff]
        %v355 = vld [vmem:[#allocation2 + $0x8] sm:$0xff]
        %v356 = vld [vmem:[#allocation2 + $0x10] sm:$0xff]
        %v357 = vld [vmem:[#allocation2 + $0x18] sm:$0xff]
        %v358 = vld [vmem:[#allocation2 + $0x20] sm:$0xff]
        %v359 = vld [vmem:[#allocation2 + $0x28] sm:$0xff]
        %v360 = vld [vmem:[#allocation2 + $0x30] sm:$0xff]
        %v361 = vld [vmem:[#allocation2 + $0x38] sm:$0xff]
        %v362 = vld [vmem:[#allocation2 + $0x40] sm:$0xff]
        %v363 = vld [vmem:[#allocation2 + $0x48] sm:$0xff]
        %v364 = vld [vmem:[#allocation2 + $0x50] sm:$0xff]
        %v365 = vld [vmem:[#allocation2 + $0x58] sm:$0xff]
        %v366 = vld [vmem:[#allocation2 + $0x60] sm:$0xff]
        %v367 = vld [vmem:[#allocation2 + $0x68] sm:$0xff]
        %v368 = vld [vmem:[#allocation2 + $0x70] sm:$0xff]
        %v369 = vld [vmem:[#allocation2 + $0x78] sm:$0xff]
        %v370 = vpack.c.bf16 %v354, %v354
        %v371 = vpack.c.bf16 %v355, %v355
        %v372 = vpack.c.bf16 %v356, %v356
        %v373 = vpack.c.bf16 %v357, %v357
        %v374 = vpack.c.bf16 %v358, %v358
        %v375 = vpack.c.bf16 %v359, %v359
        %v376 = vpack.c.bf16 %v360, %v360
        %v377 = vpack.c.bf16 %v361, %v361
        %v378 = vpack.c.bf16 %v362, %v362
        %v379 = vpack.c.bf16 %v363, %v363
        %v380 = vpack.c.bf16 %v364, %v364
        %v381 = vpack.c.bf16 %v365, %v365
        %v382 = vpack.c.bf16 %v366, %v366
        %v383 = vpack.c.bf16 %v367, %v367
        %v384 = vpack.c.bf16 %v368, %v368
        %v385 = vpack.c.bf16 %v369, %v369
        %386 = vst [vmem:[#allocation3] sm:$0xf] %v370
        %387 = vst [vmem:[#allocation3 + $0x10] sm:$0xf] %v371
        %388 = vst [vmem:[#allocation3 + $0x20] sm:$0xf] %v372
        %389 = vst [vmem:[#allocation3 + $0x30] sm:$0xf] %v373
        %390 = vst [vmem:[#allocation3 + $0x40] sm:$0xf] %v374
        %391 = vst [vmem:[#allocation3 + $0x50] sm:$0xf] %v375
        %392 = vst [vmem:[#allocation3 + $0x60] sm:$0xf] %v376
        %393 = vst [vmem:[#allocation3 + $0x70] sm:$0xf] %v377
        %394 = vst [vmem:[#allocation3 + $0x80] sm:$0xf] %v378
        %395 = vst [vmem:[#allocation3 + $0x90] sm:$0xf] %v379
        %396 = vst [vmem:[#allocation3 + $0xa0] sm:$0xf] %v380
        %397 = vst [vmem:[#allocation3 + $0xb0] sm:$0xf] %v381
        %398 = vst [vmem:[#allocation3 + $0xc0] sm:$0xf] %v382
        %399 = vst [vmem:[#allocation3 + $0xd0] sm:$0xf] %v383
        %400 = vst [vmem:[#allocation3 + $0xe0] sm:$0xf] %v384
        %401 = vst [vmem:[#allocation3 + $0xf0] sm:$0xf] %v385
        %v402 = vld [vmem:[#allocation2 + $0x1] sm:$0xff]
        %v403 = vld [vmem:[#allocation2 + $0x9] sm:$0xff]
        %v404 = vld [vmem:[#allocation2 + $0x11] sm:$0xff]
        %v405 = vld [vmem:[#allocation2 + $0x19] sm:$0xff]
        %v406 = vld [vmem:[#allocation2 + $0x21] sm:$0xff]
        %v407 = vld [vmem:[#allocation2 + $0x29] sm:$0xff]
        %v408 = vld [vmem:[#allocation2 + $0x31] sm:$0xff]
        %v409 = vld [vmem:[#allocation2 + $0x39] sm:$0xff]
        %v410 = vld [vmem:[#allocation2 + $0x41] sm:$0xff]
        %v411 = vld [vmem:[#allocation2 + $0x49] sm:$0xff]
        %v412 = vld [vmem:[#allocation2 + $0x51] sm:$0xff]
        %v413 = vld [vmem:[#allocation2 + $0x59] sm:$0xff]
        %v414 = vld [vmem:[#allocation2 + $0x61] sm:$0xff]
        %v415 = vld [vmem:[#allocation2 + $0x69] sm:$0xff]
        %v416 = vld [vmem:[#allocation2 + $0x71] sm:$0xff]
        %v417 = vld [vmem:[#allocation2 + $0x79] sm:$0xff]
        %v418 = vpack.c.bf16 %v402, %v402
        %v419 = vpack.c.bf16 %v403, %v403
        %v420 = vpack.c.bf16 %v404, %v404
        %v421 = vpack.c.bf16 %v405, %v405
        %v422 = vpack.c.bf16 %v406, %v406
        %v423 = vpack.c.bf16 %v407, %v407
        %v424 = vpack.c.bf16 %v408, %v408
        %v425 = vpack.c.bf16 %v409, %v409
        %v426 = vpack.c.bf16 %v410, %v410
        %v427 = vpack.c.bf16 %v411, %v411
        %v428 = vpack.c.bf16 %v412, %v412
        %v429 = vpack.c.bf16 %v413, %v413
        %v430 = vpack.c.bf16 %v414, %v414
        %v431 = vpack.c.bf16 %v415, %v415
        %v432 = vpack.c.bf16 %v416, %v416
        %v433 = vpack.c.bf16 %v417, %v417
        %434 = vst [vmem:[#allocation3 + $0x4] sm:$0xf] %v418
        %435 = vst [vmem:[#allocation3 + $0x14] sm:$0xf] %v419
        %436 = vst [vmem:[#allocation3 + $0x24] sm:$0xf] %v420
        %437 = vst [vmem:[#allocation3 + $0x34] sm:$0xf] %v421
        %438 = vst [vmem:[#allocation3 + $0x44] sm:$0xf] %v422
        %439 = vst [vmem:[#allocation3 + $0x54] sm:$0xf] %v423
        %440 = vst [vmem:[#allocation3 + $0x64] sm:$0xf] %v424
        %441 = vst [vmem:[#allocation3 + $0x74] sm:$0xf] %v425
        %442 = vst [vmem:[#allocation3 + $0x84] sm:$0xf] %v426
        %443 = vst [vmem:[#allocation3 + $0x94] sm:$0xf] %v427
        %444 = vst [vmem:[#allocation3 + $0xa4] sm:$0xf] %v428
        %445 = vst [vmem:[#allocation3 + $0xb4] sm:$0xf] %v429
        %446 = vst [vmem:[#allocation3 + $0xc4] sm:$0xf] %v430
        %447 = vst [vmem:[#allocation3 + $0xd4] sm:$0xf] %v431
        %448 = vst [vmem:[#allocation3 + $0xe4] sm:$0xf] %v432
        %449 = vst [vmem:[#allocation3 + $0xf4] sm:$0xf] %v433
        %v450 = vld [vmem:[#allocation2 + $0x2] sm:$0xff]
        %v451 = vld [vmem:[#allocation2 + $0xa] sm:$0xff]
        %v452 = vld [vmem:[#allocation2 + $0x12] sm:$0xff]
        %v453 = vld [vmem:[#allocation2 + $0x1a] sm:$0xff]
        %v454 = vld [vmem:[#allocation2 + $0x22] sm:$0xff]
        %v455 = vld [vmem:[#allocation2 + $0x2a] sm:$0xff]
        %v456 = vld [vmem:[#allocation2 + $0x32] sm:$0xff]
        %v457 = vld [vmem:[#allocation2 + $0x3a] sm:$0xff]
        %v458 = vld [vmem:[#allocation2 + $0x42] sm:$0xff]
        %v459 = vld [vmem:[#allocation2 + $0x4a] sm:$0xff]
        %v460 = vld [vmem:[#allocation2 + $0x52] sm:$0xff]
        %v461 = vld [vmem:[#allocation2 + $0x5a] sm:$0xff]
        %v462 = vld [vmem:[#allocation2 + $0x62] sm:$0xff]
        %v463 = vld [vmem:[#allocation2 + $0x6a] sm:$0xff]
        %v464 = vld [vmem:[#allocation2 + $0x72] sm:$0xff]
        %v465 = vld [vmem:[#allocation2 + $0x7a] sm:$0xff]
        %v466 = vpack.c.bf16 %v450, %v450
        %v467 = vpack.c.bf16 %v451, %v451
        %v468 = vpack.c.bf16 %v452, %v452
        %v469 = vpack.c.bf16 %v453, %v453
        %v470 = vpack.c.bf16 %v454, %v454
        %v471 = vpack.c.bf16 %v455, %v455
        %v472 = vpack.c.bf16 %v456, %v456
        %v473 = vpack.c.bf16 %v457, %v457
        %v474 = vpack.c.bf16 %v458, %v458
        %v475 = vpack.c.bf16 %v459, %v459
        %v476 = vpack.c.bf16 %v460, %v460
        %v477 = vpack.c.bf16 %v461, %v461
        %v478 = vpack.c.bf16 %v462, %v462
        %v479 = vpack.c.bf16 %v463, %v463
        %v480 = vpack.c.bf16 %v464, %v464
        %v481 = vpack.c.bf16 %v465, %v465
        %482 = vst [vmem:[#allocation3 + $0x8] sm:$0xf] %v466
        %483 = vst [vmem:[#allocation3 + $0x18] sm:$0xf] %v467
        %484 = vst [vmem:[#allocation3 + $0x28] sm:$0xf] %v468
        %485 = vst [vmem:[#allocation3 + $0x38] sm:$0xf] %v469
        %486 = vst [vmem:[#allocation3 + $0x48] sm:$0xf] %v470
        %487 = vst [vmem:[#allocation3 + $0x58] sm:$0xf] %v471
        %488 = vst [vmem:[#allocation3 + $0x68] sm:$0xf] %v472
        %489 = vst [vmem:[#allocation3 + $0x78] sm:$0xf] %v473
        %490 = vst [vmem:[#allocation3 + $0x88] sm:$0xf] %v474
        %491 = vst [vmem:[#allocation3 + $0x98] sm:$0xf] %v475
        %492 = vst [vmem:[#allocation3 + $0xa8] sm:$0xf] %v476
        %493 = vst [vmem:[#allocation3 + $0xb8] sm:$0xf] %v477
        %494 = vst [vmem:[#allocation3 + $0xc8] sm:$0xf] %v478
        %495 = vst [vmem:[#allocation3 + $0xd8] sm:$0xf] %v479
        %496 = vst [vmem:[#allocation3 + $0xe8] sm:$0xf] %v480
        %497 = vst [vmem:[#allocation3 + $0xf8] sm:$0xf] %v481
        %v498 = vld [vmem:[#allocation2 + $0x3] sm:$0xff]
        %v499 = vld [vmem:[#allocation2 + $0xb] sm:$0xff]
        %v500 = vld [vmem:[#allocation2 + $0x13] sm:$0xff]
        %v501 = vld [vmem:[#allocation2 + $0x1b] sm:$0xff]
        %v502 = vld [vmem:[#allocation2 + $0x23] sm:$0xff]
        %v503 = vld [vmem:[#allocation2 + $0x2b] sm:$0xff]
        %v504 = vld [vmem:[#allocation2 + $0x33] sm:$0xff]
        %v505 = vld [vmem:[#allocation2 + $0x3b] sm:$0xff]
        %v506 = vld [vmem:[#allocation2 + $0x43] sm:$0xff]
        %v507 = vld [vmem:[#allocation2 + $0x4b] sm:$0xff]
        %v508 = vld [vmem:[#allocation2 + $0x53] sm:$0xff]
        %v509 = vld [vmem:[#allocation2 + $0x5b] sm:$0xff]
        %v510 = vld [vmem:[#allocation2 + $0x63] sm:$0xff]
        %v511 = vld [vmem:[#allocation2 + $0x6b] sm:$0xff]
        %v512 = vld [vmem:[#allocation2 + $0x73] sm:$0xff]
        %v513 = vld [vmem:[#allocation2 + $0x7b] sm:$0xff]
        %v514 = vpack.c.bf16 %v498, %v498
        %v515 = vpack.c.bf16 %v499, %v499
        %v516 = vpack.c.bf16 %v500, %v500
        %v517 = vpack.c.bf16 %v501, %v501
        %v518 = vpack.c.bf16 %v502, %v502
        %v519 = vpack.c.bf16 %v503, %v503
        %v520 = vpack.c.bf16 %v504, %v504
        %v521 = vpack.c.bf16 %v505, %v505
        %v522 = vpack.c.bf16 %v506, %v506
        %v523 = vpack.c.bf16 %v507, %v507
        %v524 = vpack.c.bf16 %v508, %v508
        %v525 = vpack.c.bf16 %v509, %v509
        %v526 = vpack.c.bf16 %v510, %v510
        %v527 = vpack.c.bf16 %v511, %v511
        %v528 = vpack.c.bf16 %v512, %v512
        %v529 = vpack.c.bf16 %v513, %v513
        %530 = vst [vmem:[#allocation3 + $0xc] sm:$0xf] %v514
        %531 = vst [vmem:[#allocation3 + $0x1c] sm:$0xf] %v515
        %532 = vst [vmem:[#allocation3 + $0x2c] sm:$0xf] %v516
        %533 = vst [vmem:[#allocation3 + $0x3c] sm:$0xf] %v517
        %534 = vst [vmem:[#allocation3 + $0x4c] sm:$0xf] %v518
        %535 = vst [vmem:[#allocation3 + $0x5c] sm:$0xf] %v519
        %536 = vst [vmem:[#allocation3 + $0x6c] sm:$0xf] %v520
        %537 = vst [vmem:[#allocation3 + $0x7c] sm:$0xf] %v521
        %538 = vst [vmem:[#allocation3 + $0x8c] sm:$0xf] %v522
        %539 = vst [vmem:[#allocation3 + $0x9c] sm:$0xf] %v523
        %540 = vst [vmem:[#allocation3 + $0xac] sm:$0xf] %v524
        %541 = vst [vmem:[#allocation3 + $0xbc] sm:$0xf] %v525
        %542 = vst [vmem:[#allocation3 + $0xcc] sm:$0xf] %v526
        %543 = vst [vmem:[#allocation3 + $0xdc] sm:$0xf] %v527
        %544 = vst [vmem:[#allocation3 + $0xec] sm:$0xf] %v528
        %545 = vst [vmem:[#allocation3 + $0xfc] sm:$0xf] %v529
        %v546 = vld [vmem:[#allocation3] sm:$0xff]
        %v547 = vld [vmem:[#allocation3 + $0x8] sm:$0xff]
        %v548 = vld [vmem:[#allocation3 + $0x10] sm:$0xff]
        %v549 = vld [vmem:[#allocation3 + $0x18] sm:$0xff]
        %v550 = vld [vmem:[#allocation3 + $0x20] sm:$0xff]
        %v551 = vld [vmem:[#allocation3 + $0x28] sm:$0xff]
        %v552 = vld [vmem:[#allocation3 + $0x30] sm:$0xff]
        %v553 = vld [vmem:[#allocation3 + $0x38] sm:$0xff]
        %v554 = vld [vmem:[#allocation3 + $0x40] sm:$0xff]
        %v555 = vld [vmem:[#allocation3 + $0x48] sm:$0xff]
        %v556 = vld [vmem:[#allocation3 + $0x50] sm:$0xff]
        %v557 = vld [vmem:[#allocation3 + $0x58] sm:$0xff]
        %v558 = vld [vmem:[#allocation3 + $0x60] sm:$0xff]
        %v559 = vld [vmem:[#allocation3 + $0x68] sm:$0xff]
        %v560 = vld [vmem:[#allocation3 + $0x70] sm:$0xff]
        %v561 = vld [vmem:[#allocation3 + $0x78] sm:$0xff]
        %v562 = vld [vmem:[#allocation3 + $0x80] sm:$0xff]
        %v563 = vld [vmem:[#allocation3 + $0x88] sm:$0xff]
        %v564 = vld [vmem:[#allocation3 + $0x90] sm:$0xff]
        %v565 = vld [vmem:[#allocation3 + $0x98] sm:$0xff]
        %v566 = vld [vmem:[#allocation3 + $0xa0] sm:$0xff]
        %v567 = vld [vmem:[#allocation3 + $0xa8] sm:$0xff]
        %v568 = vld [vmem:[#allocation3 + $0xb0] sm:$0xff]
        %v569 = vld [vmem:[#allocation3 + $0xb8] sm:$0xff]
        %v570 = vld [vmem:[#allocation3 + $0xc0] sm:$0xff]
        %v571 = vld [vmem:[#allocation3 + $0xc8] sm:$0xff]
        %v572 = vld [vmem:[#allocation3 + $0xd0] sm:$0xff]
        %v573 = vld [vmem:[#allocation3 + $0xd8] sm:$0xff]
        %v574 = vld [vmem:[#allocation3 + $0xe0] sm:$0xff]
        %v575 = vld [vmem:[#allocation3 + $0xe8] sm:$0xff]
        %v576 = vld [vmem:[#allocation3 + $0xf0] sm:$0xff]
        %v577 = vld [vmem:[#allocation3 + $0xf8] sm:$0xff]
        %v578 = vld [vmem:[#allocation4] sm:$0xff]
        %v579 = vld [vmem:[#allocation4 + $0x8] sm:$0xff]
        %v580 = vld [vmem:[#allocation4 + $0x10] sm:$0xff]
        %v581 = vld [vmem:[#allocation4 + $0x18] sm:$0xff]
        %v582 = vld [vmem:[#allocation4 + $0x20] sm:$0xff]
        %v583 = vld [vmem:[#allocation4 + $0x28] sm:$0xff]
        %v584 = vld [vmem:[#allocation4 + $0x30] sm:$0xff]
        %v585 = vld [vmem:[#allocation4 + $0x38] sm:$0xff]
        %v586 = vld [vmem:[#allocation4 + $0x40] sm:$0xff]
        %v587 = vld [vmem:[#allocation4 + $0x48] sm:$0xff]
        %v588 = vld [vmem:[#allocation4 + $0x50] sm:$0xff]
        %v589 = vld [vmem:[#allocation4 + $0x58] sm:$0xff]
        %v590 = vld [vmem:[#allocation4 + $0x60] sm:$0xff]
        %v591 = vld [vmem:[#allocation4 + $0x68] sm:$0xff]
        %v592 = vld [vmem:[#allocation4 + $0x70] sm:$0xff]
        %v593 = vld [vmem:[#allocation4 + $0x78] sm:$0xff]
        %v594 = vld [vmem:[#allocation4 + $0x80] sm:$0xff]
        %v595 = vld [vmem:[#allocation4 + $0x88] sm:$0xff]
        %v596 = vld [vmem:[#allocation4 + $0x90] sm:$0xff]
        %v597 = vld [vmem:[#allocation4 + $0x98] sm:$0xff]
        %v598 = vld [vmem:[#allocation4 + $0xa0] sm:$0xff]
        %v599 = vld [vmem:[#allocation4 + $0xa8] sm:$0xff]
        %v600 = vld [vmem:[#allocation4 + $0xb0] sm:$0xff]
        %v601 = vld [vmem:[#allocation4 + $0xb8] sm:$0xff]
        %v602 = vld [vmem:[#allocation4 + $0xc0] sm:$0xff]
        %v603 = vld [vmem:[#allocation4 + $0xc8] sm:$0xff]
        %v604 = vld [vmem:[#allocation4 + $0xd0] sm:$0xff]
        %v605 = vld [vmem:[#allocation4 + $0xd8] sm:$0xff]
        %v606 = vld [vmem:[#allocation4 + $0xe0] sm:$0xff]
        %v607 = vld [vmem:[#allocation4 + $0xe8] sm:$0xff]
        %v608 = vld [vmem:[#allocation4 + $0xf0] sm:$0xff]
        %v609 = vld [vmem:[#allocation4 + $0xf8] sm:$0xff]
        %v610 = vld [vmem:[#allocation4 + $0x100] sm:$0xff]
        %v611 = vld [vmem:[#allocation4 + $0x108] sm:$0xff]
        %v612 = vld [vmem:[#allocation4 + $0x110] sm:$0xff]
        %v613 = vld [vmem:[#allocation4 + $0x118] sm:$0xff]
        %v614 = vld [vmem:[#allocation4 + $0x120] sm:$0xff]
        %v615 = vld [vmem:[#allocation4 + $0x128] sm:$0xff]
        %v616 = vld [vmem:[#allocation4 + $0x130] sm:$0xff]
        %v617 = vld [vmem:[#allocation4 + $0x138] sm:$0xff]
        %v618 = vld [vmem:[#allocation4 + $0x140] sm:$0xff]
        %v619 = vld [vmem:[#allocation4 + $0x148] sm:$0xff]
        %v620 = vld [vmem:[#allocation4 + $0x150] sm:$0xff]
        %v621 = vld [vmem:[#allocation4 + $0x158] sm:$0xff]
        %v622 = vld [vmem:[#allocation4 + $0x160] sm:$0xff]
        %v623 = vld [vmem:[#allocation4 + $0x168] sm:$0xff]
        %v624 = vld [vmem:[#allocation4 + $0x170] sm:$0xff]
        %v625 = vld [vmem:[#allocation4 + $0x178] sm:$0xff]
        %v626 = vld [vmem:[#allocation4 + $0x180] sm:$0xff]
        %v627 = vld [vmem:[#allocation4 + $0x188] sm:$0xff]
        %v628 = vld [vmem:[#allocation4 + $0x190] sm:$0xff]
        %v629 = vld [vmem:[#allocation4 + $0x198] sm:$0xff]
        %v630 = vld [vmem:[#allocation4 + $0x1a0] sm:$0xff]
        %v631 = vld [vmem:[#allocation4 + $0x1a8] sm:$0xff]
        %v632 = vld [vmem:[#allocation4 + $0x1b0] sm:$0xff]
        %v633 = vld [vmem:[#allocation4 + $0x1b8] sm:$0xff]
        %v634 = vld [vmem:[#allocation4 + $0x1c0] sm:$0xff]
        %v635 = vld [vmem:[#allocation4 + $0x1c8] sm:$0xff]
        %v636 = vld [vmem:[#allocation4 + $0x1d0] sm:$0xff]
        %v637 = vld [vmem:[#allocation4 + $0x1d8] sm:$0xff]
        %v638 = vld [vmem:[#allocation4 + $0x1e0] sm:$0xff]
        %v639 = vld [vmem:[#allocation4 + $0x1e8] sm:$0xff]
        %v640 = vld [vmem:[#allocation4 + $0x1f0] sm:$0xff]
        %v641 = vld [vmem:[#allocation4 + $0x1f8] sm:$0xff]
        %v674 = vunpack.c.l.b16 %v546
        %v675 = vunpack.c.h.b16 %v546
        %v676 = vunpack.c.l.b16 %v547
        %v677 = vunpack.c.h.b16 %v547
        %v678 = vunpack.c.l.b16 %v548
        %v679 = vunpack.c.h.b16 %v548
        %v680 = vunpack.c.l.b16 %v549
        %v681 = vunpack.c.h.b16 %v549
        %v682 = vunpack.c.l.b16 %v550
        %v683 = vunpack.c.h.b16 %v550
        %v684 = vunpack.c.l.b16 %v551
        %v685 = vunpack.c.h.b16 %v551
        %v686 = vunpack.c.l.b16 %v552
        %v687 = vunpack.c.h.b16 %v552
        %v688 = vunpack.c.l.b16 %v553
        %v689 = vunpack.c.h.b16 %v553
        %v690 = vunpack.c.l.b16 %v554
        %v691 = vunpack.c.h.b16 %v554
        %v692 = vunpack.c.l.b16 %v555
        %v693 = vunpack.c.h.b16 %v555
        %v694 = vunpack.c.l.b16 %v556
        %v695 = vunpack.c.h.b16 %v556
        %v696 = vunpack.c.l.b16 %v557
        %v697 = vunpack.c.h.b16 %v557
        %v698 = vunpack.c.l.b16 %v558
        %v699 = vunpack.c.h.b16 %v558
        %v700 = vunpack.c.l.b16 %v559
        %v701 = vunpack.c.h.b16 %v559
        %v702 = vunpack.c.l.b16 %v560
        %v703 = vunpack.c.h.b16 %v560
        %v704 = vunpack.c.l.b16 %v561
        %v705 = vunpack.c.h.b16 %v561
        %v706 = vunpack.c.l.b16 %v562
        %v707 = vunpack.c.h.b16 %v562
        %v708 = vunpack.c.l.b16 %v563
        %v709 = vunpack.c.h.b16 %v563
        %v710 = vunpack.c.l.b16 %v564
        %v711 = vunpack.c.h.b16 %v564
        %v712 = vunpack.c.l.b16 %v565
        %v713 = vunpack.c.h.b16 %v565
        %v714 = vunpack.c.l.b16 %v566
        %v715 = vunpack.c.h.b16 %v566
        %v716 = vunpack.c.l.b16 %v567
        %v717 = vunpack.c.h.b16 %v567
        %v718 = vunpack.c.l.b16 %v568
        %v719 = vunpack.c.h.b16 %v568
        %v720 = vunpack.c.l.b16 %v569
        %v721 = vunpack.c.h.b16 %v569
        %v722 = vunpack.c.l.b16 %v570
        %v723 = vunpack.c.h.b16 %v570
        %v724 = vunpack.c.l.b16 %v571
        %v725 = vunpack.c.h.b16 %v571
        %v726 = vunpack.c.l.b16 %v572
        %v727 = vunpack.c.h.b16 %v572
        %v728 = vunpack.c.l.b16 %v573
        %v729 = vunpack.c.h.b16 %v573
        %v730 = vunpack.c.l.b16 %v574
        %v731 = vunpack.c.h.b16 %v574
        %v732 = vunpack.c.l.b16 %v575
        %v733 = vunpack.c.h.b16 %v575
        %v734 = vunpack.c.l.b16 %v576
        %v735 = vunpack.c.h.b16 %v576
        %v736 = vunpack.c.l.b16 %v577
        %v737 = vunpack.c.h.b16 %v577
        %v738 = vpack.c.b16 %v678, %v674
        %v739 = vpack.c.b16 %v679, %v675
        %v740 = vpack.c.b16 %v680, %v676
        %v741 = vpack.c.b16 %v681, %v677
        %v742 = vpack.c.b16 %v686, %v682
        %v743 = vpack.c.b16 %v687, %v683
        %v744 = vpack.c.b16 %v688, %v684
        %v745 = vpack.c.b16 %v689, %v685
        %v746 = vpack.c.b16 %v694, %v690
        %v747 = vpack.c.b16 %v695, %v691
        %v748 = vpack.c.b16 %v696, %v692
        %v749 = vpack.c.b16 %v697, %v693
        %v750 = vpack.c.b16 %v702, %v698
        %v751 = vpack.c.b16 %v703, %v699
        %v752 = vpack.c.b16 %v704, %v700
        %v753 = vpack.c.b16 %v705, %v701
        %v754 = vpack.c.b16 %v710, %v706
        %v755 = vpack.c.b16 %v711, %v707
        %v756 = vpack.c.b16 %v712, %v708
        %v757 = vpack.c.b16 %v713, %v709
        %v758 = vpack.c.b16 %v718, %v714
        %v759 = vpack.c.b16 %v719, %v715
        %v760 = vpack.c.b16 %v720, %v716
        %v761 = vpack.c.b16 %v721, %v717
        %v762 = vpack.c.b16 %v726, %v722
        %v763 = vpack.c.b16 %v727, %v723
        %v764 = vpack.c.b16 %v728, %v724
        %v765 = vpack.c.b16 %v729, %v725
        %v766 = vpack.c.b16 %v734, %v730
        %v767 = vpack.c.b16 %v735, %v731
        %v768 = vpack.c.b16 %v736, %v732
        %v769 = vpack.c.b16 %v737, %v733
        %v866 = vunpack.c.l.b16 %v578
        %v867 = vunpack.c.h.b16 %v578
        %v868 = vunpack.c.l.b16 %v579
        %v869 = vunpack.c.h.b16 %v579
        %v870 = vunpack.c.l.b16 %v580
        %v871 = vunpack.c.h.b16 %v580
        %v872 = vunpack.c.l.b16 %v581
        %v873 = vunpack.c.h.b16 %v581
        %v874 = vunpack.c.l.b16 %v582
        %v875 = vunpack.c.h.b16 %v582
        %v876 = vunpack.c.l.b16 %v583
        %v877 = vunpack.c.h.b16 %v583
        %v878 = vunpack.c.l.b16 %v584
        %v879 = vunpack.c.h.b16 %v584
        %v880 = vunpack.c.l.b16 %v585
        %v881 = vunpack.c.h.b16 %v585
        %v882 = vunpack.c.l.b16 %v586
        %v883 = vunpack.c.h.b16 %v586
        %v884 = vunpack.c.l.b16 %v587
        %v885 = vunpack.c.h.b16 %v587
        %v886 = vunpack.c.l.b16 %v588
        %v887 = vunpack.c.h.b16 %v588
        %v888 = vunpack.c.l.b16 %v589
        %v889 = vunpack.c.h.b16 %v589
        %v890 = vunpack.c.l.b16 %v590
        %v891 = vunpack.c.h.b16 %v590
        %v892 = vunpack.c.l.b16 %v591
        %v893 = vunpack.c.h.b16 %v591
        %v894 = vunpack.c.l.b16 %v592
        %v895 = vunpack.c.h.b16 %v592
        %v896 = vunpack.c.l.b16 %v593
        %v897 = vunpack.c.h.b16 %v593
        %v898 = vunpack.c.l.b16 %v594
        %v899 = vunpack.c.h.b16 %v594
        %v900 = vunpack.c.l.b16 %v595
        %v901 = vunpack.c.h.b16 %v595
        %v902 = vunpack.c.l.b16 %v596
        %v903 = vunpack.c.h.b16 %v596
        %v904 = vunpack.c.l.b16 %v597
        %v905 = vunpack.c.h.b16 %v597
        %v906 = vunpack.c.l.b16 %v598
        %v907 = vunpack.c.h.b16 %v598
        %v908 = vunpack.c.l.b16 %v599
        %v909 = vunpack.c.h.b16 %v599
        %v910 = vunpack.c.l.b16 %v600
        %v911 = vunpack.c.h.b16 %v600
        %v912 = vunpack.c.l.b16 %v601
        %v913 = vunpack.c.h.b16 %v601
        %v914 = vunpack.c.l.b16 %v602
        %v915 = vunpack.c.h.b16 %v602
        %v916 = vunpack.c.l.b16 %v603
        %v917 = vunpack.c.h.b16 %v603
        %v918 = vunpack.c.l.b16 %v604
        %v919 = vunpack.c.h.b16 %v604
        %v920 = vunpack.c.l.b16 %v605
        %v921 = vunpack.c.h.b16 %v605
        %v922 = vunpack.c.l.b16 %v606
        %v923 = vunpack.c.h.b16 %v606
        %v924 = vunpack.c.l.b16 %v607
        %v925 = vunpack.c.h.b16 %v607
        %v926 = vunpack.c.l.b16 %v608
        %v927 = vunpack.c.h.b16 %v608
        %v928 = vunpack.c.l.b16 %v609
        %v929 = vunpack.c.h.b16 %v609
        %v930 = vunpack.c.l.b16 %v610
        %v931 = vunpack.c.h.b16 %v610
        %v932 = vunpack.c.l.b16 %v611
        %v933 = vunpack.c.h.b16 %v611
        %v934 = vunpack.c.l.b16 %v612
        %v935 = vunpack.c.h.b16 %v612
        %v936 = vunpack.c.l.b16 %v613
        %v937 = vunpack.c.h.b16 %v613
        %v938 = vunpack.c.l.b16 %v614
        %v939 = vunpack.c.h.b16 %v614
        %v940 = vunpack.c.l.b16 %v615
        %v941 = vunpack.c.h.b16 %v615
        %v942 = vunpack.c.l.b16 %v616
        %v943 = vunpack.c.h.b16 %v616
        %v944 = vunpack.c.l.b16 %v617
        %v945 = vunpack.c.h.b16 %v617
        %v946 = vunpack.c.l.b16 %v618
        %v947 = vunpack.c.h.b16 %v618
        %v948 = vunpack.c.l.b16 %v619
        %v949 = vunpack.c.h.b16 %v619
        %v950 = vunpack.c.l.b16 %v620
        %v951 = vunpack.c.h.b16 %v620
        %v952 = vunpack.c.l.b16 %v621
        %v953 = vunpack.c.h.b16 %v621
        %v954 = vunpack.c.l.b16 %v622
        %v955 = vunpack.c.h.b16 %v622
        %v956 = vunpack.c.l.b16 %v623
        %v957 = vunpack.c.h.b16 %v623
        %v958 = vunpack.c.l.b16 %v624
        %v959 = vunpack.c.h.b16 %v624
        %v960 = vunpack.c.l.b16 %v625
        %v961 = vunpack.c.h.b16 %v625
        %v962 = vunpack.c.l.b16 %v626
        %v963 = vunpack.c.h.b16 %v626
        %v964 = vunpack.c.l.b16 %v627
        %v965 = vunpack.c.h.b16 %v627
        %v966 = vunpack.c.l.b16 %v628
        %v967 = vunpack.c.h.b16 %v628
        %v968 = vunpack.c.l.b16 %v629
        %v969 = vunpack.c.h.b16 %v629
        %v970 = vunpack.c.l.b16 %v630
        %v971 = vunpack.c.h.b16 %v630
        %v972 = vunpack.c.l.b16 %v631
        %v973 = vunpack.c.h.b16 %v631
        %v974 = vunpack.c.l.b16 %v632
        %v975 = vunpack.c.h.b16 %v632
        %v976 = vunpack.c.l.b16 %v633
        %v977 = vunpack.c.h.b16 %v633
        %v978 = vunpack.c.l.b16 %v634
        %v979 = vunpack.c.h.b16 %v634
        %v980 = vunpack.c.l.b16 %v635
        %v981 = vunpack.c.h.b16 %v635
        %v982 = vunpack.c.l.b16 %v636
        %v983 = vunpack.c.h.b16 %v636
        %v984 = vunpack.c.l.b16 %v637
        %v985 = vunpack.c.h.b16 %v637
        %v986 = vunpack.c.l.b16 %v638
        %v987 = vunpack.c.h.b16 %v638
        %v988 = vunpack.c.l.b16 %v639
        %v989 = vunpack.c.h.b16 %v639
        %v990 = vunpack.c.l.b16 %v640
        %v991 = vunpack.c.h.b16 %v640
        %v992 = vunpack.c.l.b16 %v641
        %v993 = vunpack.c.h.b16 %v641
        %v994 = vpack.c.b16 %v868, %v866
        %v995 = vpack.c.b16 %v869, %v867
        %v996 = vpack.c.b16 %v872, %v870
        %v997 = vpack.c.b16 %v873, %v871
        %v998 = vpack.c.b16 %v876, %v874
        %v999 = vpack.c.b16 %v877, %v875
        %v1000 = vpack.c.b16 %v880, %v878
        %v1001 = vpack.c.b16 %v881, %v879
        %v1002 = vpack.c.b16 %v884, %v882
        %v1003 = vpack.c.b16 %v885, %v883
        %v1004 = vpack.c.b16 %v888, %v886
        %v1005 = vpack.c.b16 %v889, %v887
        %v1006 = vpack.c.b16 %v892, %v890
        %v1007 = vpack.c.b16 %v893, %v891
        %v1008 = vpack.c.b16 %v896, %v894
        %v1009 = vpack.c.b16 %v897, %v895
        %v1010 = vpack.c.b16 %v900, %v898
        %v1011 = vpack.c.b16 %v901, %v899
        %v1012 = vpack.c.b16 %v904, %v902
        %v1013 = vpack.c.b16 %v905, %v903
        %v1014 = vpack.c.b16 %v908, %v906
        %v1015 = vpack.c.b16 %v909, %v907
        %v1016 = vpack.c.b16 %v912, %v910
        %v1017 = vpack.c.b16 %v913, %v911
        %v1018 = vpack.c.b16 %v916, %v914
        %v1019 = vpack.c.b16 %v917, %v915
        %v1020 = vpack.c.b16 %v920, %v918
        %v1021 = vpack.c.b16 %v921, %v919
        %v1022 = vpack.c.b16 %v924, %v922
        %v1023 = vpack.c.b16 %v925, %v923
        %v1024 = vpack.c.b16 %v928, %v926
        %v1025 = vpack.c.b16 %v929, %v927
        %v1026 = vpack.c.b16 %v932, %v930
        %v1027 = vpack.c.b16 %v933, %v931
        %v1028 = vpack.c.b16 %v936, %v934
        %v1029 = vpack.c.b16 %v937, %v935
        %v1030 = vpack.c.b16 %v940, %v938
        %v1031 = vpack.c.b16 %v941, %v939
        %v1032 = vpack.c.b16 %v944, %v942
        %v1033 = vpack.c.b16 %v945, %v943
        %v1034 = vpack.c.b16 %v948, %v946
        %v1035 = vpack.c.b16 %v949, %v947
        %v1036 = vpack.c.b16 %v952, %v950
        %v1037 = vpack.c.b16 %v953, %v951
        %v1038 = vpack.c.b16 %v956, %v954
        %v1039 = vpack.c.b16 %v957, %v955
        %v1040 = vpack.c.b16 %v960, %v958
        %v1041 = vpack.c.b16 %v961, %v959
        %v1042 = vpack.c.b16 %v964, %v962
        %v1043 = vpack.c.b16 %v965, %v963
        %v1044 = vpack.c.b16 %v968, %v966
        %v1045 = vpack.c.b16 %v969, %v967
        %v1046 = vpack.c.b16 %v972, %v970
        %v1047 = vpack.c.b16 %v973, %v971
        %v1048 = vpack.c.b16 %v976, %v974
        %v1049 = vpack.c.b16 %v977, %v975
        %v1050 = vpack.c.b16 %v980, %v978
        %v1051 = vpack.c.b16 %v981, %v979
        %v1052 = vpack.c.b16 %v984, %v982
        %v1053 = vpack.c.b16 %v985, %v983
        %v1054 = vpack.c.b16 %v988, %v986
        %v1055 = vpack.c.b16 %v989, %v987
        %v1056 = vpack.c.b16 %v992, %v990
        %v1057 = vpack.c.b16 %v993, %v991
        %1122 = vmatpush.bf16.msra.mxu0 %v1008
        %1123 = vmatpush.bf16.msra.mxu0 %v1006
        %1124 = vmatpush.bf16.msra.mxu0 %v1004
        %1125 = vmatpush.bf16.msra.mxu0 %v1002
        %1126 = vmatpush.bf16.msra.mxu0 %v1000
        %1127 = vmatpush.bf16.msra.mxu0 %v998
        %1128 = vmatpush.bf16.msra.mxu0 %v996
        %1129 = vmatpush.bf16.msra.mxu0 %v994
        %1130 = vmatmul.bf16.gmra.mxu0 %v738
        %v1131 = vpop.f32.mrf.mxu0
        %v1132 = vadd.f32 0.0, %v1131
        %v1133 = vpop.f32.mrf.mxu0
        %v1134 = vadd.f32 0.0, %v1133
        %1135 = vmatmul.bf16.gmra.mxu0 %v742
        %v1136 = vpop.f32.mrf.mxu0
        %v1137 = vadd.f32 0.0, %v1136
        %v1138 = vpop.f32.mrf.mxu0
        %v1139 = vadd.f32 0.0, %v1138
        %1140 = vmatmul.bf16.gmra.mxu0 %v746
        %v1141 = vpop.f32.mrf.mxu0
        %v1142 = vadd.f32 0.0, %v1141
        %v1143 = vpop.f32.mrf.mxu0
        %v1144 = vadd.f32 0.0, %v1143
        %1145 = vmatmul.bf16.gmra.mxu0 %v750
        %v1146 = vpop.f32.mrf.mxu0
        %v1147 = vadd.f32 0.0, %v1146
        %v1148 = vpop.f32.mrf.mxu0
        %v1149 = vadd.f32 0.0, %v1148
        %1150 = vmatmul.bf16.gmra.mxu0 %v754
        %v1151 = vpop.f32.mrf.mxu0
        %v1152 = vadd.f32 0.0, %v1151
        %v1153 = vpop.f32.mrf.mxu0
        %v1154 = vadd.f32 0.0, %v1153
        %1155 = vmatmul.bf16.gmra.mxu0 %v758
        %v1156 = vpop.f32.mrf.mxu0
        %v1157 = vadd.f32 0.0, %v1156
        %v1158 = vpop.f32.mrf.mxu0
        %v1159 = vadd.f32 0.0, %v1158
        %1160 = vmatmul.bf16.gmra.mxu0 %v762
        %v1161 = vpop.f32.mrf.mxu0
        %v1162 = vadd.f32 0.0, %v1161
        %v1163 = vpop.f32.mrf.mxu0
        %v1164 = vadd.f32 0.0, %v1163
        %1165 = vmatmul.bf16.gmra.mxu0 %v766
        %v1166 = vpop.f32.mrf.mxu0
        %v1167 = vadd.f32 0.0, %v1166
        %v1168 = vpop.f32.mrf.mxu0
        %v1169 = vadd.f32 0.0, %v1168
        %1170 = vdwg.mxu0
        %1171 = vmatpush.bf16.msra.mxu0 %v1024
        %1172 = vmatpush.bf16.msra.mxu0 %v1022
        %1173 = vmatpush.bf16.msra.mxu0 %v1020
        %1174 = vmatpush.bf16.msra.mxu0 %v1018
        %1175 = vmatpush.bf16.msra.mxu0 %v1016
        %1176 = vmatpush.bf16.msra.mxu0 %v1014
        %1177 = vmatpush.bf16.msra.mxu0 %v1012
        %1178 = vmatpush.bf16.msra.mxu0 %v1010
        %1179 = vmatmul.bf16.gmra.mxu0 %v739
        %v1180 = vpop.f32.mrf.mxu0
        %v1181 = vadd.f32 %v1132, %v1180
        %v1182 = vpop.f32.mrf.mxu0
        %v1183 = vadd.f32 %v1134, %v1182
        %1184 = vmatmul.bf16.gmra.mxu0 %v743
        %v1185 = vpop.f32.mrf.mxu0
        %v1186 = vadd.f32 %v1137, %v1185
        %v1187 = vpop.f32.mrf.mxu0
        %v1188 = vadd.f32 %v1139, %v1187
        %1189 = vmatmul.bf16.gmra.mxu0 %v747
        %v1190 = vpop.f32.mrf.mxu0
        %v1191 = vadd.f32 %v1142, %v1190
        %v1192 = vpop.f32.mrf.mxu0
        %v1193 = vadd.f32 %v1144, %v1192
        %1194 = vmatmul.bf16.gmra.mxu0 %v751
        %v1195 = vpop.f32.mrf.mxu0
        %v1196 = vadd.f32 %v1147, %v1195
        %v1197 = vpop.f32.mrf.mxu0
        %v1198 = vadd.f32 %v1149, %v1197
        %1199 = vmatmul.bf16.gmra.mxu0 %v755
        %v1200 = vpop.f32.mrf.mxu0
        %v1201 = vadd.f32 %v1152, %v1200
        %v1202 = vpop.f32.mrf.mxu0
        %v1203 = vadd.f32 %v1154, %v1202
        %1204 = vmatmul.bf16.gmra.mxu0 %v759
        %v1205 = vpop.f32.mrf.mxu0
        %v1206 = vadd.f32 %v1157, %v1205
        %v1207 = vpop.f32.mrf.mxu0
        %v1208 = vadd.f32 %v1159, %v1207
        %1209 = vmatmul.bf16.gmra.mxu0 %v763
        %v1210 = vpop.f32.mrf.mxu0
        %v1211 = vadd.f32 %v1162, %v1210
        %v1212 = vpop.f32.mrf.mxu0
        %v1213 = vadd.f32 %v1164, %v1212
        %1214 = vmatmul.bf16.gmra.mxu0 %v767
        %v1215 = vpop.f32.mrf.mxu0
        %v1216 = vadd.f32 %v1167, %v1215
        %v1217 = vpop.f32.mrf.mxu0
        %v1218 = vadd.f32 %v1169, %v1217
        %1219 = vdwg.mxu0
        %1220 = vmatpush.bf16.msra.mxu0 %v1040
        %1221 = vmatpush.bf16.msra.mxu0 %v1038
        %1222 = vmatpush.bf16.msra.mxu0 %v1036
        %1223 = vmatpush.bf16.msra.mxu0 %v1034
        %1224 = vmatpush.bf16.msra.mxu0 %v1032
        %1225 = vmatpush.bf16.msra.mxu0 %v1030
        %1226 = vmatpush.bf16.msra.mxu0 %v1028
        %1227 = vmatpush.bf16.msra.mxu0 %v1026
        %1228 = vmatmul.bf16.gmra.mxu0 %v740
        %v1229 = vpop.f32.mrf.mxu0
        %v1230 = vadd.f32 %v1181, %v1229
        %v1231 = vpop.f32.mrf.mxu0
        %v1232 = vadd.f32 %v1183, %v1231
        %1233 = vmatmul.bf16.gmra.mxu0 %v744
        %v1234 = vpop.f32.mrf.mxu0
        %v1235 = vadd.f32 %v1186, %v1234
        %v1236 = vpop.f32.mrf.mxu0
        %v1237 = vadd.f32 %v1188, %v1236
        %1238 = vmatmul.bf16.gmra.mxu0 %v748
        %v1239 = vpop.f32.mrf.mxu0
        %v1240 = vadd.f32 %v1191, %v1239
        %v1241 = vpop.f32.mrf.mxu0
        %v1242 = vadd.f32 %v1193, %v1241
        %1243 = vmatmul.bf16.gmra.mxu0 %v752
        %v1244 = vpop.f32.mrf.mxu0
        %v1245 = vadd.f32 %v1196, %v1244
        %v1246 = vpop.f32.mrf.mxu0
        %v1247 = vadd.f32 %v1198, %v1246
        %1248 = vmatmul.bf16.gmra.mxu0 %v756
        %v1249 = vpop.f32.mrf.mxu0
        %v1250 = vadd.f32 %v1201, %v1249
        %v1251 = vpop.f32.mrf.mxu0
        %v1252 = vadd.f32 %v1203, %v1251
        %1253 = vmatmul.bf16.gmra.mxu0 %v760
        %v1254 = vpop.f32.mrf.mxu0
        %v1255 = vadd.f32 %v1206, %v1254
        %v1256 = vpop.f32.mrf.mxu0
        %v1257 = vadd.f32 %v1208, %v1256
        %1258 = vmatmul.bf16.gmra.mxu0 %v764
        %v1259 = vpop.f32.mrf.mxu0
        %v1260 = vadd.f32 %v1211, %v1259
        %v1261 = vpop.f32.mrf.mxu0
        %v1262 = vadd.f32 %v1213, %v1261
        %1263 = vmatmul.bf16.gmra.mxu0 %v768
        %v1264 = vpop.f32.mrf.mxu0
        %v1265 = vadd.f32 %v1216, %v1264
        %v1266 = vpop.f32.mrf.mxu0
        %v1267 = vadd.f32 %v1218, %v1266
        %1268 = vdwg.mxu0
        %1269 = vmatpush.bf16.msra.mxu0 %v1056
        %1270 = vmatpush.bf16.msra.mxu0 %v1054
        %1271 = vmatpush.bf16.msra.mxu0 %v1052
        %1272 = vmatpush.bf16.msra.mxu0 %v1050
        %1273 = vmatpush.bf16.msra.mxu0 %v1048
        %1274 = vmatpush.bf16.msra.mxu0 %v1046
        %1275 = vmatpush.bf16.msra.mxu0 %v1044
        %1276 = vmatpush.bf16.msra.mxu0 %v1042
        %1277 = vmatmul.bf16.gmra.mxu0 %v741
        %v1278 = vpop.f32.mrf.mxu0
        %v1279 = vadd.f32 %v1230, %v1278
        %v1280 = vpop.f32.mrf.mxu0
        %v1281 = vadd.f32 %v1232, %v1280
        %1282 = vmatmul.bf16.gmra.mxu0 %v745
        %v1283 = vpop.f32.mrf.mxu0
        %v1284 = vadd.f32 %v1235, %v1283
        %v1285 = vpop.f32.mrf.mxu0
        %v1286 = vadd.f32 %v1237, %v1285
        %1287 = vmatmul.bf16.gmra.mxu0 %v749
        %v1288 = vpop.f32.mrf.mxu0
        %v1289 = vadd.f32 %v1240, %v1288
        %v1290 = vpop.f32.mrf.mxu0
        %v1291 = vadd.f32 %v1242, %v1290
        %1292 = vmatmul.bf16.gmra.mxu0 %v753
        %v1293 = vpop.f32.mrf.mxu0
        %v1294 = vadd.f32 %v1245, %v1293
        %v1295 = vpop.f32.mrf.mxu0
        %v1296 = vadd.f32 %v1247, %v1295
        %1297 = vmatmul.bf16.gmra.mxu0 %v757
        %v1298 = vpop.f32.mrf.mxu0
        %v1299 = vadd.f32 %v1250, %v1298
        %v1300 = vpop.f32.mrf.mxu0
        %v1301 = vadd.f32 %v1252, %v1300
        %1302 = vmatmul.bf16.gmra.mxu0 %v761
        %v1303 = vpop.f32.mrf.mxu0
        %v1304 = vadd.f32 %v1255, %v1303
        %v1305 = vpop.f32.mrf.mxu0
        %v1306 = vadd.f32 %v1257, %v1305
        %1307 = vmatmul.bf16.gmra.mxu0 %v765
        %v1308 = vpop.f32.mrf.mxu0
        %v1309 = vadd.f32 %v1260, %v1308
        %v1310 = vpop.f32.mrf.mxu0
        %v1311 = vadd.f32 %v1262, %v1310
        %1312 = vmatmul.bf16.gmra.mxu0 %v769
        %v1313 = vpop.f32.mrf.mxu0
        %v1314 = vadd.f32 %v1265, %v1313
        %v1315 = vpop.f32.mrf.mxu0
        %v1316 = vadd.f32 %v1267, %v1315
        %1317 = vdwg.mxu0
        %1318 = vmatpush.bf16.msra.mxu0 %v1009
        %1319 = vmatpush.bf16.msra.mxu0 %v1007
        %1320 = vmatpush.bf16.msra.mxu0 %v1005
        %1321 = vmatpush.bf16.msra.mxu0 %v1003
        %1322 = vmatpush.bf16.msra.mxu0 %v1001
        %1323 = vmatpush.bf16.msra.mxu0 %v999
        %1324 = vmatpush.bf16.msra.mxu0 %v997
        %1325 = vmatpush.bf16.msra.mxu0 %v995
        %1326 = vmatmul.bf16.gmra.mxu0 %v738
        %v1327 = vpop.f32.mrf.mxu0
        %v1328 = vadd.f32 0.0, %v1327
        %v1329 = vpop.f32.mrf.mxu0
        %v1330 = vadd.f32 0.0, %v1329
        %1331 = vmatmul.bf16.gmra.mxu0 %v742
        %v1332 = vpop.f32.mrf.mxu0
        %v1333 = vadd.f32 0.0, %v1332
        %v1334 = vpop.f32.mrf.mxu0
        %v1335 = vadd.f32 0.0, %v1334
        %1336 = vmatmul.bf16.gmra.mxu0 %v746
        %v1337 = vpop.f32.mrf.mxu0
        %v1338 = vadd.f32 0.0, %v1337
        %v1339 = vpop.f32.mrf.mxu0
        %v1340 = vadd.f32 0.0, %v1339
        %1341 = vmatmul.bf16.gmra.mxu0 %v750
        %v1342 = vpop.f32.mrf.mxu0
        %v1343 = vadd.f32 0.0, %v1342
        %v1344 = vpop.f32.mrf.mxu0
        %v1345 = vadd.f32 0.0, %v1344
        %1346 = vmatmul.bf16.gmra.mxu0 %v754
        %v1347 = vpop.f32.mrf.mxu0
        %v1348 = vadd.f32 0.0, %v1347
        %v1349 = vpop.f32.mrf.mxu0
        %v1350 = vadd.f32 0.0, %v1349
        %1351 = vmatmul.bf16.gmra.mxu0 %v758
        %v1352 = vpop.f32.mrf.mxu0
        %v1353 = vadd.f32 0.0, %v1352
        %v1354 = vpop.f32.mrf.mxu0
        %v1355 = vadd.f32 0.0, %v1354
        %1356 = vmatmul.bf16.gmra.mxu0 %v762
        %v1357 = vpop.f32.mrf.mxu0
        %v1358 = vadd.f32 0.0, %v1357
        %v1359 = vpop.f32.mrf.mxu0
        %v1360 = vadd.f32 0.0, %v1359
        %1361 = vmatmul.bf16.gmra.mxu0 %v766
        %v1362 = vpop.f32.mrf.mxu0
        %v1363 = vadd.f32 0.0, %v1362
        %v1364 = vpop.f32.mrf.mxu0
        %v1365 = vadd.f32 0.0, %v1364
        %1366 = vdwg.mxu0
        %1367 = vmatpush.bf16.msra.mxu0 %v1025
        %1368 = vmatpush.bf16.msra.mxu0 %v1023
        %1369 = vmatpush.bf16.msra.mxu0 %v1021
        %1370 = vmatpush.bf16.msra.mxu0 %v1019
        %1371 = vmatpush.bf16.msra.mxu0 %v1017
        %1372 = vmatpush.bf16.msra.mxu0 %v1015
        %1373 = vmatpush.bf16.msra.mxu0 %v1013
        %1374 = vmatpush.bf16.msra.mxu0 %v1011
        %1375 = vmatmul.bf16.gmra.mxu0 %v739
        %v1376 = vpop.f32.mrf.mxu0
        %v1377 = vadd.f32 %v1328, %v1376
        %v1378 = vpop.f32.mrf.mxu0
        %v1379 = vadd.f32 %v1330, %v1378
        %1380 = vmatmul.bf16.gmra.mxu0 %v743
        %v1381 = vpop.f32.mrf.mxu0
        %v1382 = vadd.f32 %v1333, %v1381
        %v1383 = vpop.f32.mrf.mxu0
        %v1384 = vadd.f32 %v1335, %v1383
        %1385 = vmatmul.bf16.gmra.mxu0 %v747
        %v1386 = vpop.f32.mrf.mxu0
        %v1387 = vadd.f32 %v1338, %v1386
        %v1388 = vpop.f32.mrf.mxu0
        %v1389 = vadd.f32 %v1340, %v1388
        %1390 = vmatmul.bf16.gmra.mxu0 %v751
        %v1391 = vpop.f32.mrf.mxu0
        %v1392 = vadd.f32 %v1343, %v1391
        %v1393 = vpop.f32.mrf.mxu0
        %v1394 = vadd.f32 %v1345, %v1393
        %1395 = vmatmul.bf16.gmra.mxu0 %v755
        %v1396 = vpop.f32.mrf.mxu0
        %v1397 = vadd.f32 %v1348, %v1396
        %v1398 = vpop.f32.mrf.mxu0
        %v1399 = vadd.f32 %v1350, %v1398
        %1400 = vmatmul.bf16.gmra.mxu0 %v759
        %v1401 = vpop.f32.mrf.mxu0
        %v1402 = vadd.f32 %v1353, %v1401
        %v1403 = vpop.f32.mrf.mxu0
        %v1404 = vadd.f32 %v1355, %v1403
        %1405 = vmatmul.bf16.gmra.mxu0 %v763
        %v1406 = vpop.f32.mrf.mxu0
        %v1407 = vadd.f32 %v1358, %v1406
        %v1408 = vpop.f32.mrf.mxu0
        %v1409 = vadd.f32 %v1360, %v1408
        %1410 = vmatmul.bf16.gmra.mxu0 %v767
        %v1411 = vpop.f32.mrf.mxu0
        %v1412 = vadd.f32 %v1363, %v1411
        %v1413 = vpop.f32.mrf.mxu0
        %v1414 = vadd.f32 %v1365, %v1413
        %1415 = vdwg.mxu0
        %1416 = vmatpush.bf16.msra.mxu0 %v1041
        %1417 = vmatpush.bf16.msra.mxu0 %v1039
        %1418 = vmatpush.bf16.msra.mxu0 %v1037
        %1419 = vmatpush.bf16.msra.mxu0 %v1035
        %1420 = vmatpush.bf16.msra.mxu0 %v1033
        %1421 = vmatpush.bf16.msra.mxu0 %v1031
        %1422 = vmatpush.bf16.msra.mxu0 %v1029
        %1423 = vmatpush.bf16.msra.mxu0 %v1027
        %1424 = vmatmul.bf16.gmra.mxu0 %v740
        %v1425 = vpop.f32.mrf.mxu0
        %v1426 = vadd.f32 %v1377, %v1425
        %v1427 = vpop.f32.mrf.mxu0
        %v1428 = vadd.f32 %v1379, %v1427
        %1429 = vmatmul.bf16.gmra.mxu0 %v744
        %v1430 = vpop.f32.mrf.mxu0
        %v1431 = vadd.f32 %v1382, %v1430
        %v1432 = vpop.f32.mrf.mxu0
        %v1433 = vadd.f32 %v1384, %v1432
        %1434 = vmatmul.bf16.gmra.mxu0 %v748
        %v1435 = vpop.f32.mrf.mxu0
        %v1436 = vadd.f32 %v1387, %v1435
        %v1437 = vpop.f32.mrf.mxu0
        %v1438 = vadd.f32 %v1389, %v1437
        %1439 = vmatmul.bf16.gmra.mxu0 %v752
        %v1440 = vpop.f32.mrf.mxu0
        %v1441 = vadd.f32 %v1392, %v1440
        %v1442 = vpop.f32.mrf.mxu0
        %v1443 = vadd.f32 %v1394, %v1442
        %1444 = vmatmul.bf16.gmra.mxu0 %v756
        %v1445 = vpop.f32.mrf.mxu0
        %v1446 = vadd.f32 %v1397, %v1445
        %v1447 = vpop.f32.mrf.mxu0
        %v1448 = vadd.f32 %v1399, %v1447
        %1449 = vmatmul.bf16.gmra.mxu0 %v760
        %v1450 = vpop.f32.mrf.mxu0
        %v1451 = vadd.f32 %v1402, %v1450
        %v1452 = vpop.f32.mrf.mxu0
        %v1453 = vadd.f32 %v1404, %v1452
        %1454 = vmatmul.bf16.gmra.mxu0 %v764
        %v1455 = vpop.f32.mrf.mxu0
        %v1456 = vadd.f32 %v1407, %v1455
        %v1457 = vpop.f32.mrf.mxu0
        %v1458 = vadd.f32 %v1409, %v1457
        %1459 = vmatmul.bf16.gmra.mxu0 %v768
        %v1460 = vpop.f32.mrf.mxu0
        %v1461 = vadd.f32 %v1412, %v1460
        %v1462 = vpop.f32.mrf.mxu0
        %v1463 = vadd.f32 %v1414, %v1462
        %1464 = vdwg.mxu0
        %1465 = vmatpush.bf16.msra.mxu0 %v1057
        %1466 = vmatpush.bf16.msra.mxu0 %v1055
        %1467 = vmatpush.bf16.msra.mxu0 %v1053
        %1468 = vmatpush.bf16.msra.mxu0 %v1051
        %1469 = vmatpush.bf16.msra.mxu0 %v1049
        %1470 = vmatpush.bf16.msra.mxu0 %v1047
        %1471 = vmatpush.bf16.msra.mxu0 %v1045
        %1472 = vmatpush.bf16.msra.mxu0 %v1043
        %1473 = vmatmul.bf16.gmra.mxu0 %v741
        %v1474 = vpop.f32.mrf.mxu0
        %v1475 = vadd.f32 %v1426, %v1474
        %v1476 = vpop.f32.mrf.mxu0
        %v1477 = vadd.f32 %v1428, %v1476
        %1478 = vmatmul.bf16.gmra.mxu0 %v745
        %v1479 = vpop.f32.mrf.mxu0
        %v1480 = vadd.f32 %v1431, %v1479
        %v1481 = vpop.f32.mrf.mxu0
        %v1482 = vadd.f32 %v1433, %v1481
        %1483 = vmatmul.bf16.gmra.mxu0 %v749
        %v1484 = vpop.f32.mrf.mxu0
        %v1485 = vadd.f32 %v1436, %v1484
        %v1486 = vpop.f32.mrf.mxu0
        %v1487 = vadd.f32 %v1438, %v1486
        %1488 = vmatmul.bf16.gmra.mxu0 %v753
        %v1489 = vpop.f32.mrf.mxu0
        %v1490 = vadd.f32 %v1441, %v1489
        %v1491 = vpop.f32.mrf.mxu0
        %v1492 = vadd.f32 %v1443, %v1491
        %1493 = vmatmul.bf16.gmra.mxu0 %v757
        %v1494 = vpop.f32.mrf.mxu0
        %v1495 = vadd.f32 %v1446, %v1494
        %v1496 = vpop.f32.mrf.mxu0
        %v1497 = vadd.f32 %v1448, %v1496
        %1498 = vmatmul.bf16.gmra.mxu0 %v761
        %v1499 = vpop.f32.mrf.mxu0
        %v1500 = vadd.f32 %v1451, %v1499
        %v1501 = vpop.f32.mrf.mxu0
        %v1502 = vadd.f32 %v1453, %v1501
        %1503 = vmatmul.bf16.gmra.mxu0 %v765
        %v1504 = vpop.f32.mrf.mxu0
        %v1505 = vadd.f32 %v1456, %v1504
        %v1506 = vpop.f32.mrf.mxu0
        %v1507 = vadd.f32 %v1458, %v1506
        %1508 = vmatmul.bf16.gmra.mxu0 %v769
        %v1509 = vpop.f32.mrf.mxu0
        %v1510 = vadd.f32 %v1461, %v1509
        %v1511 = vpop.f32.mrf.mxu0
        %v1512 = vadd.f32 %v1463, %v1511
        %1513 = vdwg.mxu0
        %v1514 = vmul.f32 %v1279, %v1279
        %v1515 = vmul.f32 %v1281, %v1281
        %v1516 = vmul.f32 %v1284, %v1284
        %v1517 = vmul.f32 %v1286, %v1286
        %v1518 = vmul.f32 %v1289, %v1289
        %v1519 = vmul.f32 %v1291, %v1291
        %v1520 = vmul.f32 %v1294, %v1294
        %v1521 = vmul.f32 %v1296, %v1296
        %v1522 = vmul.f32 %v1299, %v1299
        %v1523 = vmul.f32 %v1301, %v1301
        %v1524 = vmul.f32 %v1304, %v1304
        %v1525 = vmul.f32 %v1306, %v1306
        %v1526 = vmul.f32 %v1309, %v1309
        %v1527 = vmul.f32 %v1311, %v1311
        %v1528 = vmul.f32 %v1314, %v1314
        %v1529 = vmul.f32 %v1316, %v1316
        %v1530 = vmul.f32 %v1475, %v1475
        %v1531 = vmul.f32 %v1477, %v1477
        %v1532 = vmul.f32 %v1480, %v1480
        %v1533 = vmul.f32 %v1482, %v1482
        %v1534 = vmul.f32 %v1485, %v1485
        %v1535 = vmul.f32 %v1487, %v1487
        %v1536 = vmul.f32 %v1490, %v1490
        %v1537 = vmul.f32 %v1492, %v1492
        %v1538 = vmul.f32 %v1495, %v1495
        %v1539 = vmul.f32 %v1497, %v1497
        %v1540 = vmul.f32 %v1500, %v1500
        %v1541 = vmul.f32 %v1502, %v1502
        %v1542 = vmul.f32 %v1505, %v1505
        %v1543 = vmul.f32 %v1507, %v1507
        %v1544 = vmul.f32 %v1510, %v1510
        %v1545 = vmul.f32 %v1512, %v1512
        %v1546 = vadd.f32 %v1514, %v1530
        %v1547 = vadd.f32 %v1515, %v1531
        %v1548 = vadd.f32 %v1516, %v1532
        %v1549 = vadd.f32 %v1517, %v1533
        %v1550 = vadd.f32 %v1518, %v1534
        %v1551 = vadd.f32 %v1519, %v1535
        %v1552 = vadd.f32 %v1520, %v1536
        %v1553 = vadd.f32 %v1521, %v1537
        %v1554 = vadd.f32 %v1522, %v1538
        %v1555 = vadd.f32 %v1523, %v1539
        %v1556 = vadd.f32 %v1524, %v1540
        %v1557 = vadd.f32 %v1525, %v1541
        %v1558 = vadd.f32 %v1526, %v1542
        %v1559 = vadd.f32 %v1527, %v1543
        %v1560 = vadd.f32 %v1528, %v1544
        %v1561 = vadd.f32 %v1529, %v1545
        %v1562 = vrsqrt.pop %v1546
        %v1563 = vmul.f32 %v1562, %v1546
        %v1564 = vmul.f32 %v1563, %v1562
        %v1565 = vmul.f32 0.5, %v1564
        %v1566 = vsub.f32 1.5, %v1565
        %v1567 = vmul.f32 %v1562, %v1566
        %v1568 = vmul.f32 %v1546, %v1567
        %vm1569 = vcmp.eq.f32.partialorder %v1546, inf
        %v1570 = vsel %vm1569, %v1546, %v1568
        %vm1571 = vcmp.eq.f32.partialorder %v1546, 0.0
        %v1572 = vand.u32 %v1546, 2147483648
        %v1573 = vsel %vm1571, %v1572, %v1570
        %v1574 = vrsqrt.pop %v1547
        %v1575 = vmul.f32 %v1574, %v1547
        %v1576 = vmul.f32 %v1575, %v1574
        %v1577 = vmul.f32 0.5, %v1576
        %v1578 = vsub.f32 1.5, %v1577
        %v1579 = vmul.f32 %v1574, %v1578
        %v1580 = vmul.f32 %v1547, %v1579
        %vm1581 = vcmp.eq.f32.partialorder %v1547, inf
        %v1582 = vsel %vm1581, %v1547, %v1580
        %vm1583 = vcmp.eq.f32.partialorder %v1547, 0.0
        %v1584 = vand.u32 %v1547, 2147483648
        %v1585 = vsel %vm1583, %v1584, %v1582
        %v1586 = vrsqrt.pop %v1548
        %v1587 = vmul.f32 %v1586, %v1548
        %v1588 = vmul.f32 %v1587, %v1586
        %v1589 = vmul.f32 0.5, %v1588
        %v1590 = vsub.f32 1.5, %v1589
        %v1591 = vmul.f32 %v1586, %v1590
        %v1592 = vmul.f32 %v1548, %v1591
        %vm1593 = vcmp.eq.f32.partialorder %v1548, inf
        %v1594 = vsel %vm1593, %v1548, %v1592
        %vm1595 = vcmp.eq.f32.partialorder %v1548, 0.0
        %v1596 = vand.u32 %v1548, 2147483648
        %v1597 = vsel %vm1595, %v1596, %v1594
        %v1598 = vrsqrt.pop %v1549
        %v1599 = vmul.f32 %v1598, %v1549
        %v1600 = vmul.f32 %v1599, %v1598
        %v1601 = vmul.f32 0.5, %v1600
        %v1602 = vsub.f32 1.5, %v1601
        %v1603 = vmul.f32 %v1598, %v1602
        %v1604 = vmul.f32 %v1549, %v1603
        %vm1605 = vcmp.eq.f32.partialorder %v1549, inf
        %v1606 = vsel %vm1605, %v1549, %v1604
        %vm1607 = vcmp.eq.f32.partialorder %v1549, 0.0
        %v1608 = vand.u32 %v1549, 2147483648
        %v1609 = vsel %vm1607, %v1608, %v1606
        %v1610 = vrsqrt.pop %v1550
        %v1611 = vmul.f32 %v1610, %v1550
        %v1612 = vmul.f32 %v1611, %v1610
        %v1613 = vmul.f32 0.5, %v1612
        %v1614 = vsub.f32 1.5, %v1613
        %v1615 = vmul.f32 %v1610, %v1614
        %v1616 = vmul.f32 %v1550, %v1615
        %vm1617 = vcmp.eq.f32.partialorder %v1550, inf
        %v1618 = vsel %vm1617, %v1550, %v1616
        %vm1619 = vcmp.eq.f32.partialorder %v1550, 0.0
        %v1620 = vand.u32 %v1550, 2147483648
        %v1621 = vsel %vm1619, %v1620, %v1618
        %v1622 = vrsqrt.pop %v1551
        %v1623 = vmul.f32 %v1622, %v1551
        %v1624 = vmul.f32 %v1623, %v1622
        %v1625 = vmul.f32 0.5, %v1624
        %v1626 = vsub.f32 1.5, %v1625
        %v1627 = vmul.f32 %v1622, %v1626
        %v1628 = vmul.f32 %v1551, %v1627
        %vm1629 = vcmp.eq.f32.partialorder %v1551, inf
        %v1630 = vsel %vm1629, %v1551, %v1628
        %vm1631 = vcmp.eq.f32.partialorder %v1551, 0.0
        %v1632 = vand.u32 %v1551, 2147483648
        %v1633 = vsel %vm1631, %v1632, %v1630
        %v1634 = vrsqrt.pop %v1552
        %v1635 = vmul.f32 %v1634, %v1552
        %v1636 = vmul.f32 %v1635, %v1634
        %v1637 = vmul.f32 0.5, %v1636
        %v1638 = vsub.f32 1.5, %v1637
        %v1639 = vmul.f32 %v1634, %v1638
        %v1640 = vmul.f32 %v1552, %v1639
        %vm1641 = vcmp.eq.f32.partialorder %v1552, inf
        %v1642 = vsel %vm1641, %v1552, %v1640
        %vm1643 = vcmp.eq.f32.partialorder %v1552, 0.0
        %v1644 = vand.u32 %v1552, 2147483648
        %v1645 = vsel %vm1643, %v1644, %v1642
        %v1646 = vrsqrt.pop %v1553
        %v1647 = vmul.f32 %v1646, %v1553
        %v1648 = vmul.f32 %v1647, %v1646
        %v1649 = vmul.f32 0.5, %v1648
        %v1650 = vsub.f32 1.5, %v1649
        %v1651 = vmul.f32 %v1646, %v1650
        %v1652 = vmul.f32 %v1553, %v1651
        %vm1653 = vcmp.eq.f32.partialorder %v1553, inf
        %v1654 = vsel %vm1653, %v1553, %v1652
        %vm1655 = vcmp.eq.f32.partialorder %v1553, 0.0
        %v1656 = vand.u32 %v1553, 2147483648
        %v1657 = vsel %vm1655, %v1656, %v1654
        %v1658 = vrsqrt.pop %v1554
        %v1659 = vmul.f32 %v1658, %v1554
        %v1660 = vmul.f32 %v1659, %v1658
        %v1661 = vmul.f32 0.5, %v1660
        %v1662 = vsub.f32 1.5, %v1661
        %v1663 = vmul.f32 %v1658, %v1662
        %v1664 = vmul.f32 %v1554, %v1663
        %vm1665 = vcmp.eq.f32.partialorder %v1554, inf
        %v1666 = vsel %vm1665, %v1554, %v1664
        %vm1667 = vcmp.eq.f32.partialorder %v1554, 0.0
        %v1668 = vand.u32 %v1554, 2147483648
        %v1669 = vsel %vm1667, %v1668, %v1666
        %v1670 = vrsqrt.pop %v1555
        %v1671 = vmul.f32 %v1670, %v1555
        %v1672 = vmul.f32 %v1671, %v1670
        %v1673 = vmul.f32 0.5, %v1672
        %v1674 = vsub.f32 1.5, %v1673
        %v1675 = vmul.f32 %v1670, %v1674
        %v1676 = vmul.f32 %v1555, %v1675
        %vm1677 = vcmp.eq.f32.partialorder %v1555, inf
        %v1678 = vsel %vm1677, %v1555, %v1676
        %vm1679 = vcmp.eq.f32.partialorder %v1555, 0.0
        %v1680 = vand.u32 %v1555, 2147483648
        %v1681 = vsel %vm1679, %v1680, %v1678
        %v1682 = vrsqrt.pop %v1556
        %v1683 = vmul.f32 %v1682, %v1556
        %v1684 = vmul.f32 %v1683, %v1682
        %v1685 = vmul.f32 0.5, %v1684
        %v1686 = vsub.f32 1.5, %v1685
        %v1687 = vmul.f32 %v1682, %v1686
        %v1688 = vmul.f32 %v1556, %v1687
        %vm1689 = vcmp.eq.f32.partialorder %v1556, inf
        %v1690 = vsel %vm1689, %v1556, %v1688
        %vm1691 = vcmp.eq.f32.partialorder %v1556, 0.0
        %v1692 = vand.u32 %v1556, 2147483648
        %v1693 = vsel %vm1691, %v1692, %v1690
        %v1694 = vrsqrt.pop %v1557
        %v1695 = vmul.f32 %v1694, %v1557
        %v1696 = vmul.f32 %v1695, %v1694
        %v1697 = vmul.f32 0.5, %v1696
        %v1698 = vsub.f32 1.5, %v1697
        %v1699 = vmul.f32 %v1694, %v1698
        %v1700 = vmul.f32 %v1557, %v1699
        %vm1701 = vcmp.eq.f32.partialorder %v1557, inf
        %v1702 = vsel %vm1701, %v1557, %v1700
        %vm1703 = vcmp.eq.f32.partialorder %v1557, 0.0
        %v1704 = vand.u32 %v1557, 2147483648
        %v1705 = vsel %vm1703, %v1704, %v1702
        %v1706 = vrsqrt.pop %v1558
        %v1707 = vmul.f32 %v1706, %v1558
        %v1708 = vmul.f32 %v1707, %v1706
        %v1709 = vmul.f32 0.5, %v1708
        %v1710 = vsub.f32 1.5, %v1709
        %v1711 = vmul.f32 %v1706, %v1710
        %v1712 = vmul.f32 %v1558, %v1711
        %vm1713 = vcmp.eq.f32.partialorder %v1558, inf
        %v1714 = vsel %vm1713, %v1558, %v1712
        %vm1715 = vcmp.eq.f32.partialorder %v1558, 0.0
        %v1716 = vand.u32 %v1558, 2147483648
        %v1717 = vsel %vm1715, %v1716, %v1714
        %v1718 = vrsqrt.pop %v1559
        %v1719 = vmul.f32 %v1718, %v1559
        %v1720 = vmul.f32 %v1719, %v1718
        %v1721 = vmul.f32 0.5, %v1720
        %v1722 = vsub.f32 1.5, %v1721
        %v1723 = vmul.f32 %v1718, %v1722
        %v1724 = vmul.f32 %v1559, %v1723
        %vm1725 = vcmp.eq.f32.partialorder %v1559, inf
        %v1726 = vsel %vm1725, %v1559, %v1724
        %vm1727 = vcmp.eq.f32.partialorder %v1559, 0.0
        %v1728 = vand.u32 %v1559, 2147483648
        %v1729 = vsel %vm1727, %v1728, %v1726
        %v1730 = vrsqrt.pop %v1560
        %v1731 = vmul.f32 %v1730, %v1560
        %v1732 = vmul.f32 %v1731, %v1730
        %v1733 = vmul.f32 0.5, %v1732
        %v1734 = vsub.f32 1.5, %v1733
        %v1735 = vmul.f32 %v1730, %v1734
        %v1736 = vmul.f32 %v1560, %v1735
        %vm1737 = vcmp.eq.f32.partialorder %v1560, inf
        %v1738 = vsel %vm1737, %v1560, %v1736
        %vm1739 = vcmp.eq.f32.partialorder %v1560, 0.0
        %v1740 = vand.u32 %v1560, 2147483648
        %v1741 = vsel %vm1739, %v1740, %v1738
        %v1742 = vrsqrt.pop %v1561
        %v1743 = vmul.f32 %v1742, %v1561
        %v1744 = vmul.f32 %v1743, %v1742
        %v1745 = vmul.f32 0.5, %v1744
        %v1746 = vsub.f32 1.5, %v1745
        %v1747 = vmul.f32 %v1742, %v1746
        %v1748 = vmul.f32 %v1561, %v1747
        %vm1749 = vcmp.eq.f32.partialorder %v1561, inf
        %v1750 = vsel %vm1749, %v1561, %v1748
        %vm1751 = vcmp.eq.f32.partialorder %v1561, 0.0
        %v1752 = vand.u32 %v1561, 2147483648
        %v1753 = vsel %vm1751, %v1752, %v1750
        %1754 = vxpose.xlu0.b32.start [1/16] %v1573, 128
        %1755 = vxpose.xlu0.b32.cont [2/16] %v1585, 128
        %1756 = vxpose.xlu0.b32.cont [3/16] %v1597, 128
        %1757 = vxpose.xlu0.b32.cont [4/16] %v1609, 128
        %1758 = vxpose.xlu0.b32.cont [5/16] %v1621, 128
        %1759 = vxpose.xlu0.b32.cont [6/16] %v1633, 128
        %1760 = vxpose.xlu0.b32.cont [7/16] %v1645, 128
        %1761 = vxpose.xlu0.b32.cont [8/16] %v1657, 128
        %1762 = vxpose.xlu0.b32.cont [9/16] %v1669, 128
        %1763 = vxpose.xlu0.b32.cont [10/16] %v1681, 128
        %1764 = vxpose.xlu0.b32.cont [11/16] %v1693, 128
        %1765 = vxpose.xlu0.b32.cont [12/16] %v1705, 128
        %1766 = vxpose.xlu0.b32.cont [13/16] %v1717, 128
        %1767 = vxpose.xlu0.b32.cont [14/16] %v1729, 128
        %1768 = vxpose.xlu0.b32.cont [15/16] %v1741, 128
        %1769 = vxpose.xlu0.b32.end [16/16] %v1753, 128
        %v1770 = vpop.trf.xlu0
        %v1771 = vpop.trf.xlu0
        %v1772 = vpop.trf.xlu0
        %v1773 = vpop.trf.xlu0
        %v1774 = vpop.trf.xlu0
        %v1775 = vpop.trf.xlu0
        %v1776 = vpop.trf.xlu0
        %v1777 = vpop.trf.xlu0
        %v1778 = vpop.trf.xlu0
        %v1779 = vpop.trf.xlu0
        %v1780 = vpop.trf.xlu0
        %v1781 = vpop.trf.xlu0
        %v1782 = vpop.trf.xlu0
        %v1783 = vpop.trf.xlu0
        %v1784 = vpop.trf.xlu0
        %v1785 = vpop.trf.xlu0
        %1786 = vst [vmem:[%s293] sm:$0xff] %v1770
        %1787 = vst [vmem:[%s293 + $0x8] sm:$0xff] %v1771
        %1788 = vst [vmem:[%s293 + $0x10] sm:$0xff] %v1772
        %1789 = vst [vmem:[%s293 + $0x18] sm:$0xff] %v1773
        %1790 = vst [vmem:[%s293 + $0x20] sm:$0xff] %v1774
        %1791 = vst [vmem:[%s293 + $0x28] sm:$0xff] %v1775
        %1792 = vst [vmem:[%s293 + $0x30] sm:$0xff] %v1776
        %1793 = vst [vmem:[%s293 + $0x38] sm:$0xff] %v1777
        %1794 = vst [vmem:[%s293 + $0x40] sm:$0xff] %v1778
        %1795 = vst [vmem:[%s293 + $0x48] sm:$0xff] %v1779
        %1796 = vst [vmem:[%s293 + $0x50] sm:$0xff] %v1780
        %1797 = vst [vmem:[%s293 + $0x58] sm:$0xff] %v1781
        %1798 = vst [vmem:[%s293 + $0x60] sm:$0xff] %v1782
        %1799 = vst [vmem:[%s293 + $0x68] sm:$0xff] %v1783
        %1800 = vst [vmem:[%s293 + $0x70] sm:$0xff] %v1784
        %1801 = vst [vmem:[%s293 + $0x78] sm:$0xff] %v1785
        %p1802 = scmp.lt.s32.totalorder %s19, 1
        %s1803 = scalar_select %p1802, %s19, 1
        %p1804 = scmp.lt.s32.totalorder %s20, 0
        %s1805 = scalar_select %p1804, %s20, 0
        %s1806 = smul.addr %s1803, 16
        %s1807 = sadd.s32 %s1805, %s1806
        %s1808 = smul.addr %s1807, 8
        %s1809 = scalar_lea.vmem %s3, %s1808
        // Predicated region
        $region37: #{causal_stft_magnitude.1} parent=31 // pred_check
          %p1810 = pneg %p128
        $region38: #{causal_stft_magnitude.1} parent=31 // pred_check_branch
          %1812 = sbr.rel (%p1810) target = $region40
        $region39: #{causal_stft_magnitude.1} parent=31 // pred_region
          _
        $region40: #{causal_stft_magnitude.1} parent=31 // pred_fallthru
          _
      $region32: #{causal_stft_magnitude.1} parent=5 // pred_fallthru
        _
      %p1813 = scmp.le.s32.totalorder 2, %s10
      // Predicated region
      $region41: #{causal_stft_magnitude.1} parent=5 // pred_check
        %p1814 = pneg %p1813
      $region42: #{causal_stft_magnitude.1} parent=5 // pred_check_branch
        %1816 = sbr.rel (%p1814) target = $region44
      $region43: #{causal_stft_magnitude.1} parent=5 // pred_region
        %s1817 = ssub.s32 %s10, 2
        // Predicated region
        $region45: #{causal_stft_magnitude.1} parent=43 // pred_check
          %p1818 = pneg %p134
        $region46: #{causal_stft_magnitude.1} parent=43 // pred_check_branch
          %1820 = sbr.rel (%p1818) target = $region48
        $region47: #{causal_stft_magnitude.1} parent=43 // pred_region
          %p1821 = scmp.lt.s32.totalorder %s21, 1
          %s1822 = scalar_select %p1821, %s21, 1
          %p1823 = scmp.lt.s32.totalorder %s22, 0
          %s1824 = scalar_select %p1823, %s22, 0
          %s1825 = smul.addr %s1822, 16
          %s1826 = sadd.s32 %s1824, %s1825
          %s1827 = smul.addr %s1826, 8
          %s1828 = scalar_lea.vmem %s3, %s1827
        $region48: #{causal_stft_magnitude.1} parent=43 // pred_fallthru
          _
      $region44: #{causal_stft_magnitude.1} parent=5 // pred_fallthru
        _
    $region6: #{causal_stft_magnitude.1} parent=1 // loop_footer
      %s14 = sadd.s32 1, %s10
    $region7: #{causal_stft_magnitude.1} parent=1 // loop_footer_branch
      %9 = sbr.rel target = $region3
    $region8: #{causal_stft_magnitude.1} parent=1 // loop_exit
      _
    %1829 = vsyncpa [#allocation5], 1
    %s1830 = scalar_lea.sflag [#allocation5], 1
    %1831 = vsyncpa %s1830, 1

</llo_original>
